<compile_context>
chip_gen: v5e
topology: v5e:2x2
jax: 0.10.0
libtpu: 0.0.40
codegen_flags: <defaults>
</compile_context>

<pallas_src>
import functools

import jax
import jax.numpy as jnp
from jax.experimental import pallas as pl
from jax.experimental.pallas import tpu as pltpu


VMEM_LIMIT = 32 * 1024 * 1024  # safe on v5e/v6e (128 MiB) and v7x (64 MiB physical)

CFG = dict(vocab=64, max_pos=32, hidden=128, heads=2, head_dim=64,
           intermediate=256, layers=2, n_classes=3, npad=128)


# ------------------------------ Pallas kernel -------------------------------


def _ln(x_f32, g_ref, b_ref, eps):
    """LayerNorm over the last dim; stats in f32; gamma/beta refs are (1, H)."""
    mu = jnp.mean(x_f32, axis=-1, keepdims=True)
    d = x_f32 - mu
    var = jnp.mean(d * d, axis=-1, keepdims=True)
    return (d * jax.lax.rsqrt(var + eps) * g_ref[...].astype(jnp.float32)
            + b_ref[...].astype(jnp.float32))


def _bert_kernel(
    emb_ref, bias_ref, emb_g_ref, emb_b_ref,
    wq_ref, bq_ref, wk_ref, bk_ref, wv_ref, bv_ref,
    wo_ref, bo_ref, ln1_g_ref, ln1_b_ref,
    w1_ref, b1_ref, w2_ref, b2_ref, ln2_g_ref, ln2_b_ref,
    pool_w_ref, pool_b_ref, cls_w_ref, cls_b_ref,
    out_ref,
    h_ref,
    *, B, S, n_heads, head_dim, hidden, ln_eps,
):
    """One grid step == one encoder layer. Hidden state resident in VMEM scratch."""
    l = pl.program_id(0)
    M = B * S

    # ---- prologue (only at layer 0): embedding LayerNorm into resident state ----
    @pl.when(l == 0)
    def _():
        e = emb_ref[...].astype(jnp.float32)
        h_ref[...] = _ln(e, emb_g_ref, emb_b_ref, ln_eps).astype(h_ref.dtype)

    x = h_ref[...]                                   # (M, H) bf16, layer input
    x_f32 = x.astype(jnp.float32)

    # additive key-mask bias (0 attend / -1e9 pad), hoisted out of the head loop
    bias3 = bias_ref[...].astype(jnp.float32)[:, None, :]            # (B, 1, S)

    # ---- multi-head self-attention; heads indexed on a leading (non-lane) axis ----
    attn = jnp.zeros((M, hidden), jnp.float32)
    for h in range(n_heads):                         # static loop, small n_heads
        q = (jnp.dot(x, wq_ref[h], preferred_element_type=jnp.float32)
             + bq_ref[h].astype(jnp.float32))        # (M, Dh); 1/sqrt(Dh) folded in wq/bq
        k = (jnp.dot(x, wk_ref[h], preferred_element_type=jnp.float32)
             + bk_ref[h].astype(jnp.float32))
        v = (jnp.dot(x, wv_ref[h], preferred_element_type=jnp.float32)
             + bv_ref[h].astype(jnp.float32))
        q3 = q.astype(jnp.bfloat16).reshape(B, S, head_dim)
        k3 = k.astype(jnp.bfloat16).reshape(B, S, head_dim)
        v3 = v.astype(jnp.bfloat16).reshape(B, S, head_dim)

        s = jnp.einsum("bqd,bkd->bqk", q3, k3,
                       preferred_element_type=jnp.float32) + bias3    # (B, S, S) f32
        m = jnp.max(s, axis=-1, keepdims=True)
        p = jnp.exp(s - m)
        p = p * pl.reciprocal(jnp.sum(p, axis=-1, keepdims=True), approx=True)
        ctx = jnp.einsum("bqk,bkd->bqd", p.astype(jnp.bfloat16), v3,
                         preferred_element_type=jnp.float32)          # (B, S, Dh)

        # fold this head back via its slice of the output projection -> no lane concat
        attn = attn + jnp.dot(ctx.reshape(M, head_dim).astype(jnp.bfloat16),
                              wo_ref[h], preferred_element_type=jnp.float32)

    # attention output: bias + residual + LayerNorm
    h1 = _ln(attn + bo_ref[...].astype(jnp.float32) + x_f32,
             ln1_g_ref, ln1_b_ref, ln_eps)                            # (M, H) f32

    # ---- FFN: gelu(h1 @ w1 + b1) @ w2 + b2, residual, LayerNorm ----
    h1b = h1.astype(jnp.bfloat16)
    f = (jnp.dot(h1b, w1_ref[...], preferred_element_type=jnp.float32)
         + b1_ref[...].astype(jnp.float32))
    f = jax.nn.gelu(f, approximate=True)             # tanh-GELU -> EUP slot
    f = jnp.dot(f.astype(jnp.bfloat16), w2_ref[...], preferred_element_type=jnp.float32)
    h2 = _ln(f + b2_ref[...].astype(jnp.float32) + h1, ln2_g_ref, ln2_b_ref, ln_eps)

    h_ref[...] = h2.astype(h_ref.dtype)              # write back resident state

    # ---- epilogue (only at last layer): pooler (tanh on [CLS]) + classifier ----
    @pl.when(l == pl.num_programs(0) - 1)
    def _():
        cls = h2.astype(jnp.bfloat16).reshape(B, S, hidden)[:, 0, :]  # (B, H) [CLS] rows
        pooled = jnp.tanh(jnp.dot(cls, pool_w_ref[...],
                                  preferred_element_type=jnp.float32)
                          + pool_b_ref[...].astype(jnp.float32))
        # TODO(synk): Dropout(p=0.3) is identity here (eval-mode semantics only).
        logits = (jnp.dot(pooled.astype(jnp.bfloat16), cls_w_ref[...],
                          preferred_element_type=jnp.float32)
                  + cls_b_ref[...].astype(jnp.float32))               # (B, 128) padded
        out_ref[...] = logits                         # lane-dense store; sliced in XLA


# ------------------------------ model wrapper --------------------------------


def init_params(key, cfg):
    keys = iter(jax.random.split(key, 64))
    std = 0.02
    H, I, L = cfg["hidden"], cfg["intermediate"], cfg["layers"]
    nH, Dh = cfg["heads"], cfg["head_dim"]
    NPAD, NC = cfg["npad"], cfg["n_classes"]

    def w(*shape, dtype=jnp.bfloat16):
        return (std * jax.random.normal(next(keys), shape, jnp.float32)).astype(dtype)

    scale = 1.0 / float(Dh) ** 0.5
    p = dict(
        word_emb=w(cfg["vocab"], H, dtype=jnp.float32),
        pos_emb=w(cfg["max_pos"], H, dtype=jnp.float32),
        type_emb=w(2, H, dtype=jnp.float32),
        emb_ln_g=jnp.ones((1, H), jnp.float32),
        emb_ln_b=jnp.zeros((1, H), jnp.float32),
        # per-head attention weights, heads on a leading (non-lane) axis,
        # layers stacked along axis 0; 1/sqrt(Dh) folded into the Q projection.
        wq=(w(L, nH, H, Dh, dtype=jnp.float32) * scale).astype(jnp.bfloat16),
        bq=jnp.zeros((L, nH, 1, Dh), jnp.float32),
        wk=w(L, nH, H, Dh), bk=jnp.zeros((L, nH, 1, Dh), jnp.float32),
        wv=w(L, nH, H, Dh), bv=jnp.zeros((L, nH, 1, Dh), jnp.float32),
        wo=w(L, nH, Dh, H), bo=jnp.zeros((L, 1, H), jnp.float32),
        ln1_g=jnp.ones((L, 1, H), jnp.float32), ln1_b=jnp.zeros((L, 1, H), jnp.float32),
        w1=w(L, H, I), b1=jnp.zeros((L, 1, I), jnp.float32),
        w2=w(L, I, H), b2=jnp.zeros((L, 1, H), jnp.float32),
        ln2_g=jnp.ones((L, 1, H), jnp.float32), ln2_b=jnp.zeros((L, 1, H), jnp.float32),
        pooler_w=w(H, H), pooler_b=jnp.zeros((1, H), jnp.float32),
    )
    # classifier padded to 128 output lanes (logits sliced to n_classes outside)
    cls_w = w(H, NC, dtype=jnp.float32)
    p["cls_w_pad"] = jnp.zeros((H, NPAD), jnp.float32).at[:, :NC].set(cls_w).astype(jnp.bfloat16)
    p["cls_b_pad"] = jnp.zeros((1, NPAD), jnp.float32)
    return p


def sentiment_classifier_forward(input_ids, attention_mask, params, cfg):
    """Equivalent of SentimentClassifier.forward(input_ids, attention_mask)."""
    B, S = input_ids.shape
    H, I, L = cfg["hidden"], cfg["intermediate"], cfg["layers"]
    nH, Dh, NPAD = cfg["heads"], cfg["head_dim"], cfg["npad"]
    M = B * S

    # additive attention-mask bias, computed once: 0.0 where attend, -1e9 where pad
    attn_bias = (attention_mask.astype(jnp.float32) - 1.0) * 1e9          # (B, S)

    # --- BERT embeddings: gather + sum stay in XLA (data-dependent gather) ---
    emb = (params["word_emb"][input_ids]
           + params["pos_emb"][None, :S, :]
           + params["type_emb"][0][None, None, :]).reshape(M, H)          # (M, H) f32

    def lspec(*shape):   # per-layer block, indexed by grid step along the layer axis
        return pl.BlockSpec((None,) + shape, lambda l: (l,) + (0,) * len(shape))

    def cspec(*shape):   # grid-invariant block
        return pl.BlockSpec(shape, lambda l: (0,) * len(shape))

    logits_pad = pl.pallas_call(
        functools.partial(_bert_kernel, B=B, S=S, n_heads=nH, head_dim=Dh,
                          hidden=H, ln_eps=1e-12),
        out_shape=jax.ShapeDtypeStruct((B, NPAD), jnp.float32),
        grid=(L,),
        in_specs=[
            cspec(M, H),                                 # embeddings
            cspec(B, S),                                 # mask bias
            cspec(1, H), cspec(1, H),                    # embedding LN gamma/beta
            lspec(nH, H, Dh), lspec(nH, 1, Dh),          # wq, bq (scale folded)
            lspec(nH, H, Dh), lspec(nH, 1, Dh),          # wk, bk
            lspec(nH, H, Dh), lspec(nH, 1, Dh),          # wv, bv
            lspec(nH, Dh, H), lspec(1, H),               # wo (per-head), bo
            lspec(1, H), lspec(1, H),                    # attn-out LN gamma/beta
            lspec(H, I), lspec(1, I),                    # FFN w1, b1
            lspec(I, H), lspec(1, H),                    # FFN w2, b2
            lspec(1, H), lspec(1, H),                    # FFN LN gamma/beta
            cspec(H, H), cspec(1, H),                    # pooler
            cspec(H, NPAD), cspec(1, NPAD),              # classifier (padded to 128)
        ],
        out_specs=cspec(B, NPAD),
        scratch_shapes=[pltpu.VMEM((M, H), jnp.bfloat16)],   # resident hidden state
        compiler_params=pltpu.CompilerParams(
            dimension_semantics=("arbitrary",),              # layers are sequential
            vmem_limit_bytes=VMEM_LIMIT),
    )(emb, attn_bias, params["emb_ln_g"], params["emb_ln_b"],
      params["wq"], params["bq"], params["wk"], params["bk"],
      params["wv"], params["bv"], params["wo"], params["bo"],
      params["ln1_g"], params["ln1_b"], params["w1"], params["b1"],
      params["w2"], params["b2"], params["ln2_g"], params["ln2_b"],
      params["pooler_w"], params["pooler_b"], params["cls_w_pad"], params["cls_b_pad"])

    return logits_pad[:, :cfg["n_classes"]]                  # (B, n_classes)


# ---------------------------------- main ------------------------------------


if __name__ == "__main__":
    key = jax.random.PRNGKey(0)
    k_param, k_ids = jax.random.split(key)

    B, S = 2, 8
    params = init_params(k_param, CFG)

    input_ids = jax.random.randint(k_ids, (B, S), 0, CFG["vocab"], dtype=jnp.int32)
    attention_mask = jnp.array(
        [[1, 1, 1, 1, 1, 1, 1, 1],
         [1, 1, 1, 1, 1, 1, 0, 0]], dtype=jnp.int32)

    fwd = jax.jit(lambda ids, mask, prm: sentiment_classifier_forward(ids, mask, prm, CFG))
    logits = fwd(input_ids, attention_mask, params)
    logits = jax.block_until_ready(logits)

    assert logits.shape == (B, CFG["n_classes"])
    assert bool(jnp.all(jnp.isfinite(logits)))
    print("KERNEL_OK")
</pallas_src>

<mosaic_0001>
module attributes {stable_mosaic.version = 11 : i64} {
  func.func @_bert_kernel(%arg0: i32, %arg1: memref<16x128xf32, #tpu.memory_space<vmem>>, %arg2: memref<2x8xf32, #tpu.memory_space<vmem>>, %arg3: memref<1x128xf32, #tpu.memory_space<vmem>>, %arg4: memref<1x128xf32, #tpu.memory_space<vmem>>, %arg5: memref<1x2x128x64xbf16, #tpu.memory_space<vmem>>, %arg6: memref<1x2x1x64xf32, #tpu.memory_space<vmem>>, %arg7: memref<1x2x128x64xbf16, #tpu.memory_space<vmem>>, %arg8: memref<1x2x1x64xf32, #tpu.memory_space<vmem>>, %arg9: memref<1x2x128x64xbf16, #tpu.memory_space<vmem>>, %arg10: memref<1x2x1x64xf32, #tpu.memory_space<vmem>>, %arg11: memref<1x2x64x128xbf16, #tpu.memory_space<vmem>>, %arg12: memref<1x1x128xf32, #tpu.memory_space<vmem>>, %arg13: memref<1x1x128xf32, #tpu.memory_space<vmem>>, %arg14: memref<1x1x128xf32, #tpu.memory_space<vmem>>, %arg15: memref<1x128x256xbf16, #tpu.memory_space<vmem>>, %arg16: memref<1x1x256xf32, #tpu.memory_space<vmem>>, %arg17: memref<1x256x128xbf16, #tpu.memory_space<vmem>>, %arg18: memref<1x1x128xf32, #tpu.memory_space<vmem>>, %arg19: memref<1x1x128xf32, #tpu.memory_space<vmem>>, %arg20: memref<1x1x128xf32, #tpu.memory_space<vmem>>, %arg21: memref<128x128xbf16, #tpu.memory_space<vmem>>, %arg22: memref<1x128xf32, #tpu.memory_space<vmem>>, %arg23: memref<128x128xbf16, #tpu.memory_space<vmem>>, %arg24: memref<1x128xf32, #tpu.memory_space<vmem>>, %arg25: memref<2x128xf32, #tpu.memory_space<vmem>>, %arg26: memref<16x128xbf16, #tpu.memory_space<vmem>>) attributes {dimension_semantics = [#tpu.dimension_semantics<arbitrary>], iteration_bounds = array<i64: 2>, scalar_prefetch = 0 : i64, scratch_operands = 1 : i64, tpu.core_type = #tpu.core_type<tc>, window_params = [{pipeline_mode = #tpu.pipeline_mode<synchronous>, transform_indices = @transform_0, window_bounds = array<i64: 16, 128>}, {pipeline_mode = #tpu.pipeline_mode<synchronous>, transform_indices = @transform_1, window_bounds = array<i64: 2, 8>}, {pipeline_mode = #tpu.pipeline_mode<synchronous>, transform_indices = @transform_2, window_bounds = array<i64: 1, 128>}, {pipeline_mode = #tpu.pipeline_mode<synchronous>, transform_indices = @transform_3, window_bounds = array<i64: 1, 128>}, {transform_indices = @transform_4, window_bounds = array<i64: 1, 2, 128, 64>}, {transform_indices = @transform_5, window_bounds = array<i64: 1, 2, 1, 64>}, {transform_indices = @transform_6, window_bounds = array<i64: 1, 2, 128, 64>}, {transform_indices = @transform_7, window_bounds = array<i64: 1, 2, 1, 64>}, {transform_indices = @transform_8, window_bounds = array<i64: 1, 2, 128, 64>}, {transform_indices = @transform_9, window_bounds = array<i64: 1, 2, 1, 64>}, {transform_indices = @transform_10, window_bounds = array<i64: 1, 2, 64, 128>}, {transform_indices = @transform_11, window_bounds = array<i64: 1, 1, 128>}, {transform_indices = @transform_12, window_bounds = array<i64: 1, 1, 128>}, {transform_indices = @transform_13, window_bounds = array<i64: 1, 1, 128>}, {transform_indices = @transform_14, window_bounds = array<i64: 1, 128, 256>}, {transform_indices = @transform_15, window_bounds = array<i64: 1, 1, 256>}, {transform_indices = @transform_16, window_bounds = array<i64: 1, 256, 128>}, {transform_indices = @transform_17, window_bounds = array<i64: 1, 1, 128>}, {transform_indices = @transform_18, window_bounds = array<i64: 1, 1, 128>}, {transform_indices = @transform_19, window_bounds = array<i64: 1, 1, 128>}, {pipeline_mode = #tpu.pipeline_mode<synchronous>, transform_indices = @transform_20, window_bounds = array<i64: 128, 128>}, {pipeline_mode = #tpu.pipeline_mode<synchronous>, transform_indices = @transform_21, window_bounds = array<i64: 1, 128>}, {pipeline_mode = #tpu.pipeline_mode<synchronous>, transform_indices = @transform_22, window_bounds = array<i64: 128, 128>}, {pipeline_mode = #tpu.pipeline_mode<synchronous>, transform_indices = @transform_23, window_bounds = array<i64: 1, 128>}, {pipeline_mode = #tpu.pipeline_mode<synchronous>, transform_indices = @transform_24, window_bounds = array<i64: 2, 128>}]} {
    %c0_i32 = arith.constant 0 : i32
    %0 = arith.cmpi eq, %arg0, %c0_i32 : i32
    %1 = arith.extui %0 : i1 to i32
    %c0_i32_0 = arith.constant 0 : i32
    %2 = arith.cmpi ne, %1, %c0_i32_0 : i32
    scf.if %2 {
      %c0_121 = arith.constant 0 : index
      %c0_122 = arith.constant 0 : index
      %192 = vector.load %arg1[%c0_121, %c0_122] : memref<16x128xf32, #tpu.memory_space<vmem>>, vector<16x128xf32>
      %cst_123 = arith.constant dense<0.000000e+00> : vector<16xf32>
      %193 = vector.multi_reduction <add>, %192, %cst_123 [1] : vector<16x128xf32> to vector<16xf32>
      %194 = vector.shape_cast %193 : vector<16xf32> to vector<16x1xf32>
      %cst_124 = arith.constant 1.280000e+02 : f32
      %195 = vector.broadcast %cst_124 : f32 to vector<16x1xf32>
      %196 = arith.divf %194, %195 : vector<16x1xf32>
      %197 = vector.broadcast %196 : vector<16x1xf32> to vector<16x128xf32>
      %198 = arith.subf %192, %197 : vector<16x128xf32>
      %199 = arith.mulf %198, %198 : vector<16x128xf32>
      %cst_125 = arith.constant dense<0.000000e+00> : vector<16xf32>
      %200 = vector.multi_reduction <add>, %199, %cst_125 [1] : vector<16x128xf32> to vector<16xf32>
      %201 = vector.shape_cast %200 : vector<16xf32> to vector<16x1xf32>
      %cst_126 = arith.constant 1.280000e+02 : f32
      %202 = vector.broadcast %cst_126 : f32 to vector<16x1xf32>
      %203 = arith.divf %201, %202 : vector<16x1xf32>
      %cst_127 = arith.constant 9.99999996E-13 : f32
      %204 = vector.broadcast %cst_127 : f32 to vector<16x1xf32>
      %205 = arith.addf %203, %204 : vector<16x1xf32>
      %206 = math.rsqrt %205 : vector<16x1xf32>
      %207 = vector.broadcast %206 : vector<16x1xf32> to vector<16x128xf32>
      %208 = arith.mulf %198, %207 : vector<16x128xf32>
      %c0_128 = arith.constant 0 : index
      %c0_129 = arith.constant 0 : index
      %209 = vector.load %arg3[%c0_128, %c0_129] : memref<1x128xf32, #tpu.memory_space<vmem>>, vector<1x128xf32>
      %210 = vector.broadcast %209 : vector<1x128xf32> to vector<16x128xf32>
      %211 = arith.mulf %208, %210 : vector<16x128xf32>
      %c0_130 = arith.constant 0 : index
      %c0_131 = arith.constant 0 : index
      %212 = vector.load %arg4[%c0_130, %c0_131] : memref<1x128xf32, #tpu.memory_space<vmem>>, vector<1x128xf32>
      %213 = vector.broadcast %212 : vector<1x128xf32> to vector<16x128xf32>
      %214 = arith.addf %211, %213 : vector<16x128xf32>
      %215 = arith.truncf %214 : vector<16x128xf32> to vector<16x128xbf16>
      %c0_132 = arith.constant 0 : index
      %c0_133 = arith.constant 0 : index
      %216 = vector.load %arg26[%c0_132, %c0_133] : memref<16x128xbf16, #tpu.memory_space<vmem>>, vector<16x128xbf16>
      tpu.vector_store %arg26[%c0_132, %c0_133], %215 {strides = array<i32>} : memref<16x128xbf16, #tpu.memory_space<vmem>>, vector<16x128xbf16>,
    } else {
    }
    %c0 = arith.constant 0 : index
    %c0_1 = arith.constant 0 : index
    %3 = vector.load %arg26[%c0, %c0_1] : memref<16x128xbf16, #tpu.memory_space<vmem>>, vector<16x128xbf16>
    %4 = arith.extf %3 : vector<16x128xbf16> to vector<16x128xf32>
    %c0_2 = arith.constant 0 : index
    %c0_3 = arith.constant 0 : index
    %5 = vector.load %arg2[%c0_2, %c0_3] : memref<2x8xf32, #tpu.memory_space<vmem>>, vector<2x8xf32>
    %6 = vector.shape_cast %5 : vector<2x8xf32> to vector<2x1x8xf32>
    %cst = arith.constant 0.000000e+00 : f32
    %7 = vector.broadcast %cst : f32 to vector<16x128xf32>
    %c0_4 = arith.constant 0 : index
    %c0_5 = arith.constant 0 : index
    %c0_6 = arith.constant 0 : index
    %c0_7 = arith.constant 0 : index
    %8 = vector.load %arg5[%c0_4, %c0_5, %c0_6, %c0_7] : memref<1x2x128x64xbf16, #tpu.memory_space<vmem>>, vector<1x1x128x64xbf16>
    %9 = vector.shape_cast %8 : vector<1x1x128x64xbf16> to vector<128x64xbf16>
    %cst_8 = arith.constant dense<0.000000e+00> : vector<16x64xf32>
    %10 = tpu.matmul %3, %9, %cst_8 {dimension_numbers = #tpu.dot_dimension_numbers<[1], [0], [0], [1], [0, 0, 1, 1], [], []>} : vector<16x128xbf16>, vector<128x64xbf16>, vector<16x64xf32> -> vector<16x64xf32>
    %c0_9 = arith.constant 0 : index
    %c0_10 = arith.constant 0 : index
    %c0_11 = arith.constant 0 : index
    %c0_12 = arith.constant 0 : index
    %11 = vector.load %arg6[%c0_9, %c0_10, %c0_11, %c0_12] : memref<1x2x1x64xf32, #tpu.memory_space<vmem>>, vector<1x1x1x64xf32>
    %12 = vector.shape_cast %11 : vector<1x1x1x64xf32> to vector<1x64xf32>
    %13 = vector.broadcast %12 : vector<1x64xf32> to vector<16x64xf32>
    %14 = arith.addf %10, %13 : vector<16x64xf32>
    %c0_13 = arith.constant 0 : index
    %c0_14 = arith.constant 0 : index
    %c0_15 = arith.constant 0 : index
    %c0_16 = arith.constant 0 : index
    %15 = vector.load %arg7[%c0_13, %c0_14, %c0_15, %c0_16] : memref<1x2x128x64xbf16, #tpu.memory_space<vmem>>, vector<1x1x128x64xbf16>
    %16 = vector.shape_cast %15 : vector<1x1x128x64xbf16> to vector<128x64xbf16>
    %cst_17 = arith.constant dense<0.000000e+00> : vector<16x64xf32>
    %17 = tpu.matmul %3, %16, %cst_17 {dimension_numbers = #tpu.dot_dimension_numbers<[1], [0], [0], [1], [0, 0, 1, 1], [], []>} : vector<16x128xbf16>, vector<128x64xbf16>, vector<16x64xf32> -> vector<16x64xf32>
    %c0_18 = arith.constant 0 : index
    %c0_19 = arith.constant 0 : index
    %c0_20 = arith.constant 0 : index
    %c0_21 = arith.constant 0 : index
    %18 = vector.load %arg8[%c0_18, %c0_19, %c0_20, %c0_21] : memref<1x2x1x64xf32, #tpu.memory_space<vmem>>, vector<1x1x1x64xf32>
    %19 = vector.shape_cast %18 : vector<1x1x1x64xf32> to vector<1x64xf32>
    %20 = vector.broadcast %19 : vector<1x64xf32> to vector<16x64xf32>
    %21 = arith.addf %17, %20 : vector<16x64xf32>
    %c0_22 = arith.constant 0 : index
    %c0_23 = arith.constant 0 : index
    %c0_24 = arith.constant 0 : index
    %c0_25 = arith.constant 0 : index
    %22 = vector.load %arg9[%c0_22, %c0_23, %c0_24, %c0_25] : memref<1x2x128x64xbf16, #tpu.memory_space<vmem>>, vector<1x1x128x64xbf16>
    %23 = vector.shape_cast %22 : vector<1x1x128x64xbf16> to vector<128x64xbf16>
    %cst_26 = arith.constant dense<0.000000e+00> : vector<16x64xf32>
    %24 = tpu.matmul %3, %23, %cst_26 {dimension_numbers = #tpu.dot_dimension_numbers<[1], [0], [0], [1], [0, 0, 1, 1], [], []>} : vector<16x128xbf16>, vector<128x64xbf16>, vector<16x64xf32> -> vector<16x64xf32>
    %c0_27 = arith.constant 0 : index
    %c0_28 = arith.constant 0 : index
    %c0_29 = arith.constant 0 : index
    %c0_30 = arith.constant 0 : index
    %25 = vector.load %arg10[%c0_27, %c0_28, %c0_29, %c0_30] : memref<1x2x1x64xf32, #tpu.memory_space<vmem>>, vector<1x1x1x64xf32>
    %26 = vector.shape_cast %25 : vector<1x1x1x64xf32> to vector<1x64xf32>
    %27 = vector.broadcast %26 : vector<1x64xf32> to vector<16x64xf32>
    %28 = arith.addf %24, %27 : vector<16x64xf32>
    %29 = arith.truncf %14 : vector<16x64xf32> to vector<16x64xbf16>
    %30 = vector.shape_cast %29 : vector<16x64xbf16> to vector<2x8x64xbf16>
    %31 = arith.truncf %21 : vector<16x64xf32> to vector<16x64xbf16>
    %32 = vector.shape_cast %31 : vector<16x64xbf16> to vector<2x8x64xbf16>
    %33 = arith.truncf %28 : vector<16x64xf32> to vector<16x64xbf16>
    %34 = vector.shape_cast %33 : vector<16x64xbf16> to vector<2x8x64xbf16>
    "tpu.trace_start"() <{level = 10 : i32, message = "bqd,bkd->bqk"}> : () -> ()
    %cst_31 = arith.constant dense<0.000000e+00> : vector<2x8x8xf32>
    %35 = tpu.matmul %30, %32, %cst_31 {dimension_numbers = #tpu.dot_dimension_numbers<[2], [2], [1], [1], [0, 0, 0, 1, 1, 1], [0], [0]>} : vector<2x8x64xbf16>, vector<2x8x64xbf16>, vector<2x8x8xf32> -> vector<2x8x8xf32>
    "tpu.trace_stop"() : () -> ()
    %36 = vector.broadcast %6 : vector<2x1x8xf32> to vector<2x8x8xf32>
    %37 = arith.addf %35, %36 : vector<2x8x8xf32>
    %cst_32 = arith.constant dense<0xFF800000> : vector<2x8xf32>
    %38 = vector.multi_reduction <maximumf>, %37, %cst_32 [2] : vector<2x8x8xf32> to vector<2x8xf32>
    %39 = vector.shape_cast %38 : vector<2x8xf32> to vector<2x8x1xf32>
    %40 = vector.broadcast %39 : vector<2x8x1xf32> to vector<2x8x8xf32>
    %41 = arith.subf %37, %40 : vector<2x8x8xf32>
    %42 = math.exp %41 : vector<2x8x8xf32>
    %cst_33 = arith.constant dense<0.000000e+00> : vector<2x8xf32>
    %43 = vector.multi_reduction <add>, %42, %cst_33 [2] : vector<2x8x8xf32> to vector<2x8xf32>
    %44 = vector.shape_cast %43 : vector<2x8xf32> to vector<2x8x1xf32>
    %45 = tpu.reciprocal %44 {approx = true} : vector<2x8x1xf32> -> vector<2x8x1xf32>
    %46 = vector.broadcast %45 : vector<2x8x1xf32> to vector<2x8x8xf32>
    %47 = arith.mulf %42, %46 : vector<2x8x8xf32>
    %48 = arith.truncf %47 : vector<2x8x8xf32> to vector<2x8x8xbf16>
    "tpu.trace_start"() <{level = 10 : i32, message = "bqk,bkd->bqd"}> : () -> ()
    %cst_34 = arith.constant dense<0.000000e+00> : vector<2x8x64xf32>
    %49 = tpu.matmul %48, %34, %cst_34 {dimension_numbers = #tpu.dot_dimension_numbers<[2], [1], [1], [2], [0, 0, 0, 1, 1, 2], [0], [0]>} : vector<2x8x8xbf16>, vector<2x8x64xbf16>, vector<2x8x64xf32> -> vector<2x8x64xf32>
    "tpu.trace_stop"() : () -> ()
    %50 = vector.shape_cast %49 : vector<2x8x64xf32> to vector<16x64xf32>
    %51 = arith.truncf %50 : vector<16x64xf32> to vector<16x64xbf16>
    %c0_35 = arith.constant 0 : index
    %c0_36 = arith.constant 0 : index
    %c0_37 = arith.constant 0 : index
    %c0_38 = arith.constant 0 : index
    %52 = vector.load %arg11[%c0_35, %c0_36, %c0_37, %c0_38] : memref<1x2x64x128xbf16, #tpu.memory_space<vmem>>, vector<1x1x64x128xbf16>
    %53 = vector.shape_cast %52 : vector<1x1x64x128xbf16> to vector<64x128xbf16>
    %cst_39 = arith.constant dense<0.000000e+00> : vector<16x128xf32>
    %54 = tpu.matmul %51, %53, %cst_39 {dimension_numbers = #tpu.dot_dimension_numbers<[1], [0], [0], [1], [0, 0, 1, 1], [], []>} : vector<16x64xbf16>, vector<64x128xbf16>, vector<16x128xf32> -> vector<16x128xf32>
    %55 = arith.addf %7, %54 : vector<16x128xf32>
    %c0_40 = arith.constant 0 : index
    %c1 = arith.constant 1 : index
    %c0_41 = arith.constant 0 : index
    %c0_42 = arith.constant 0 : index
    %56 = vector.load %arg5[%c0_40, %c1, %c0_41, %c0_42] : memref<1x2x128x64xbf16, #tpu.memory_space<vmem>>, vector<1x1x128x64xbf16>
    %57 = vector.shape_cast %56 : vector<1x1x128x64xbf16> to vector<128x64xbf16>
    %cst_43 = arith.constant dense<0.000000e+00> : vector<16x64xf32>
    %58 = tpu.matmul %3, %57, %cst_43 {dimension_numbers = #tpu.dot_dimension_numbers<[1], [0], [0], [1], [0, 0, 1, 1], [], []>} : vector<16x128xbf16>, vector<128x64xbf16>, vector<16x64xf32> -> vector<16x64xf32>
    %c0_44 = arith.constant 0 : index
    %c1_45 = arith.constant 1 : index
    %c0_46 = arith.constant 0 : index
    %c0_47 = arith.constant 0 : index
    %59 = vector.load %arg6[%c0_44, %c1_45, %c0_46, %c0_47] : memref<1x2x1x64xf32, #tpu.memory_space<vmem>>, vector<1x1x1x64xf32>
    %60 = vector.shape_cast %59 : vector<1x1x1x64xf32> to vector<1x64xf32>
    %61 = vector.broadcast %60 : vector<1x64xf32> to vector<16x64xf32>
    %62 = arith.addf %58, %61 : vector<16x64xf32>
    %c0_48 = arith.constant 0 : index
    %c1_49 = arith.constant 1 : index
    %c0_50 = arith.constant 0 : index
    %c0_51 = arith.constant 0 : index
    %63 = vector.load %arg7[%c0_48, %c1_49, %c0_50, %c0_51] : memref<1x2x128x64xbf16, #tpu.memory_space<vmem>>, vector<1x1x128x64xbf16>
    %64 = vector.shape_cast %63 : vector<1x1x128x64xbf16> to vector<128x64xbf16>
    %cst_52 = arith.constant dense<0.000000e+00> : vector<16x64xf32>
    %65 = tpu.matmul %3, %64, %cst_52 {dimension_numbers = #tpu.dot_dimension_numbers<[1], [0], [0], [1], [0, 0, 1, 1], [], []>} : vector<16x128xbf16>, vector<128x64xbf16>, vector<16x64xf32> -> vector<16x64xf32>
    %c0_53 = arith.constant 0 : index
    %c1_54 = arith.constant 1 : index
    %c0_55 = arith.constant 0 : index
    %c0_56 = arith.constant 0 : index
    %66 = vector.load %arg8[%c0_53, %c1_54, %c0_55, %c0_56] : memref<1x2x1x64xf32, #tpu.memory_space<vmem>>, vector<1x1x1x64xf32>
    %67 = vector.shape_cast %66 : vector<1x1x1x64xf32> to vector<1x64xf32>
    %68 = vector.broadcast %67 : vector<1x64xf32> to vector<16x64xf32>
    %69 = arith.addf %65, %68 : vector<16x64xf32>
    %c0_57 = arith.constant 0 : index
    %c1_58 = arith.constant 1 : index
    %c0_59 = arith.constant 0 : index
    %c0_60 = arith.constant 0 : index
    %70 = vector.load %arg9[%c0_57, %c1_58, %c0_59, %c0_60] : memref<1x2x128x64xbf16, #tpu.memory_space<vmem>>, vector<1x1x128x64xbf16>
    %71 = vector.shape_cast %70 : vector<1x1x128x64xbf16> to vector<128x64xbf16>
    %cst_61 = arith.constant dense<0.000000e+00> : vector<16x64xf32>
    %72 = tpu.matmul %3, %71, %cst_61 {dimension_numbers = #tpu.dot_dimension_numbers<[1], [0], [0], [1], [0, 0, 1, 1], [], []>} : vector<16x128xbf16>, vector<128x64xbf16>, vector<16x64xf32> -> vector<16x64xf32>
    %c0_62 = arith.constant 0 : index
    %c1_63 = arith.constant 1 : index
    %c0_64 = arith.constant 0 : index
    %c0_65 = arith.constant 0 : index
    %73 = vector.load %arg10[%c0_62, %c1_63, %c0_64, %c0_65] : memref<1x2x1x64xf32, #tpu.memory_space<vmem>>, vector<1x1x1x64xf32>
    %74 = vector.shape_cast %73 : vector<1x1x1x64xf32> to vector<1x64xf32>
    %75 = vector.broadcast %74 : vector<1x64xf32> to vector<16x64xf32>
    %76 = arith.addf %72, %75 : vector<16x64xf32>
    %77 = arith.truncf %62 : vector<16x64xf32> to vector<16x64xbf16>
    %78 = vector.shape_cast %77 : vector<16x64xbf16> to vector<2x8x64xbf16>
    %79 = arith.truncf %69 : vector<16x64xf32> to vector<16x64xbf16>
    %80 = vector.shape_cast %79 : vector<16x64xbf16> to vector<2x8x64xbf16>
    %81 = arith.truncf %76 : vector<16x64xf32> to vector<16x64xbf16>
    %82 = vector.shape_cast %81 : vector<16x64xbf16> to vector<2x8x64xbf16>
    "tpu.trace_start"() <{level = 10 : i32, message = "bqd,bkd->bqk"}> : () -> ()
    %cst_66 = arith.constant dense<0.000000e+00> : vector<2x8x8xf32>
    %83 = tpu.matmul %78, %80, %cst_66 {dimension_numbers = #tpu.dot_dimension_numbers<[2], [2], [1], [1], [0, 0, 0, 1, 1, 1], [0], [0]>} : vector<2x8x64xbf16>, vector<2x8x64xbf16>, vector<2x8x8xf32> -> vector<2x8x8xf32>
    "tpu.trace_stop"() : () -> ()
    %84 = vector.broadcast %6 : vector<2x1x8xf32> to vector<2x8x8xf32>
    %85 = arith.addf %83, %84 : vector<2x8x8xf32>
    %cst_67 = arith.constant dense<0xFF800000> : vector<2x8xf32>
    %86 = vector.multi_reduction <maximumf>, %85, %cst_67 [2] : vector<2x8x8xf32> to vector<2x8xf32>
    %87 = vector.shape_cast %86 : vector<2x8xf32> to vector<2x8x1xf32>
    %88 = vector.broadcast %87 : vector<2x8x1xf32> to vector<2x8x8xf32>
    %89 = arith.subf %85, %88 : vector<2x8x8xf32>
    %90 = math.exp %89 : vector<2x8x8xf32>
    %cst_68 = arith.constant dense<0.000000e+00> : vector<2x8xf32>
    %91 = vector.multi_reduction <add>, %90, %cst_68 [2] : vector<2x8x8xf32> to vector<2x8xf32>
    %92 = vector.shape_cast %91 : vector<2x8xf32> to vector<2x8x1xf32>
    %93 = tpu.reciprocal %92 {approx = true} : vector<2x8x1xf32> -> vector<2x8x1xf32>
    %94 = vector.broadcast %93 : vector<2x8x1xf32> to vector<2x8x8xf32>
    %95 = arith.mulf %90, %94 : vector<2x8x8xf32>
    %96 = arith.truncf %95 : vector<2x8x8xf32> to vector<2x8x8xbf16>
    "tpu.trace_start"() <{level = 10 : i32, message = "bqk,bkd->bqd"}> : () -> ()
    %cst_69 = arith.constant dense<0.000000e+00> : vector<2x8x64xf32>
    %97 = tpu.matmul %96, %82, %cst_69 {dimension_numbers = #tpu.dot_dimension_numbers<[2], [1], [1], [2], [0, 0, 0, 1, 1, 2], [0], [0]>} : vector<2x8x8xbf16>, vector<2x8x64xbf16>, vector<2x8x64xf32> -> vector<2x8x64xf32>
    "tpu.trace_stop"() : () -> ()
    %98 = vector.shape_cast %97 : vector<2x8x64xf32> to vector<16x64xf32>
    %99 = arith.truncf %98 : vector<16x64xf32> to vector<16x64xbf16>
    %c0_70 = arith.constant 0 : index
    %c1_71 = arith.constant 1 : index
    %c0_72 = arith.constant 0 : index
    %c0_73 = arith.constant 0 : index
    %100 = vector.load %arg11[%c0_70, %c1_71, %c0_72, %c0_73] : memref<1x2x64x128xbf16, #tpu.memory_space<vmem>>, vector<1x1x64x128xbf16>
    %101 = vector.shape_cast %100 : vector<1x1x64x128xbf16> to vector<64x128xbf16>
    %cst_74 = arith.constant dense<0.000000e+00> : vector<16x128xf32>
    %102 = tpu.matmul %99, %101, %cst_74 {dimension_numbers = #tpu.dot_dimension_numbers<[1], [0], [0], [1], [0, 0, 1, 1], [], []>} : vector<16x64xbf16>, vector<64x128xbf16>, vector<16x128xf32> -> vector<16x128xf32>
    %103 = arith.addf %55, %102 : vector<16x128xf32>
    %c0_75 = arith.constant 0 : index
    %c0_76 = arith.constant 0 : index
    %c0_77 = arith.constant 0 : index
    %104 = vector.load %arg12[%c0_75, %c0_76, %c0_77] : memref<1x1x128xf32, #tpu.memory_space<vmem>>, vector<1x1x128xf32>
    %105 = vector.shape_cast %104 : vector<1x1x128xf32> to vector<1x128xf32>
    %106 = vector.broadcast %105 : vector<1x128xf32> to vector<16x128xf32>
    %107 = arith.addf %103, %106 : vector<16x128xf32>
    %108 = arith.addf %107, %4 : vector<16x128xf32>
    %cst_78 = arith.constant dense<0.000000e+00> : vector<16xf32>
    %109 = vector.multi_reduction <add>, %108, %cst_78 [1] : vector<16x128xf32> to vector<16xf32>
    %110 = vector.shape_cast %109 : vector<16xf32> to vector<16x1xf32>
    %cst_79 = arith.constant 1.280000e+02 : f32
    %111 = vector.broadcast %cst_79 : f32 to vector<16x1xf32>
    %112 = arith.divf %110, %111 : vector<16x1xf32>
    %113 = vector.broadcast %112 : vector<16x1xf32> to vector<16x128xf32>
    %114 = arith.subf %108, %113 : vector<16x128xf32>
    %115 = arith.mulf %114, %114 : vector<16x128xf32>
    %cst_80 = arith.constant dense<0.000000e+00> : vector<16xf32>
    %116 = vector.multi_reduction <add>, %115, %cst_80 [1] : vector<16x128xf32> to vector<16xf32>
    %117 = vector.shape_cast %116 : vector<16xf32> to vector<16x1xf32>
    %cst_81 = arith.constant 1.280000e+02 : f32
    %118 = vector.broadcast %cst_81 : f32 to vector<16x1xf32>
    %119 = arith.divf %117, %118 : vector<16x1xf32>
    %cst_82 = arith.constant 9.99999996E-13 : f32
    %120 = vector.broadcast %cst_82 : f32 to vector<16x1xf32>
    %121 = arith.addf %119, %120 : vector<16x1xf32>
    %122 = math.rsqrt %121 : vector<16x1xf32>
    %123 = vector.broadcast %122 : vector<16x1xf32> to vector<16x128xf32>
    %124 = arith.mulf %114, %123 : vector<16x128xf32>
    %c0_83 = arith.constant 0 : index
    %c0_84 = arith.constant 0 : index
    %c0_85 = arith.constant 0 : index
    %125 = vector.load %arg13[%c0_83, %c0_84, %c0_85] : memref<1x1x128xf32, #tpu.memory_space<vmem>>, vector<1x1x128xf32>
    %126 = vector.shape_cast %125 : vector<1x1x128xf32> to vector<1x128xf32>
    %127 = vector.broadcast %126 : vector<1x128xf32> to vector<16x128xf32>
    %128 = arith.mulf %124, %127 : vector<16x128xf32>
    %c0_86 = arith.constant 0 : index
    %c0_87 = arith.constant 0 : index
    %c0_88 = arith.constant 0 : index
    %129 = vector.load %arg14[%c0_86, %c0_87, %c0_88] : memref<1x1x128xf32, #tpu.memory_space<vmem>>, vector<1x1x128xf32>
    %130 = vector.shape_cast %129 : vector<1x1x128xf32> to vector<1x128xf32>
    %131 = vector.broadcast %130 : vector<1x128xf32> to vector<16x128xf32>
    %132 = arith.addf %128, %131 : vector<16x128xf32>
    %133 = arith.truncf %132 : vector<16x128xf32> to vector<16x128xbf16>
    %c0_89 = arith.constant 0 : index
    %c0_90 = arith.constant 0 : index
    %c0_91 = arith.constant 0 : index
    %134 = vector.load %arg15[%c0_89, %c0_90, %c0_91] : memref<1x128x256xbf16, #tpu.memory_space<vmem>>, vector<1x128x256xbf16>
    %135 = vector.shape_cast %134 : vector<1x128x256xbf16> to vector<128x256xbf16>
    %cst_92 = arith.constant dense<0.000000e+00> : vector<16x256xf32>
    %136 = tpu.matmul %133, %135, %cst_92 {dimension_numbers = #tpu.dot_dimension_numbers<[1], [0], [0], [1], [0, 0, 1, 1], [], []>} : vector<16x128xbf16>, vector<128x256xbf16>, vector<16x256xf32> -> vector<16x256xf32>
    %c0_93 = arith.constant 0 : index
    %c0_94 = arith.constant 0 : index
    %c0_95 = arith.constant 0 : index
    %137 = vector.load %arg16[%c0_93, %c0_94, %c0_95] : memref<1x1x256xf32, #tpu.memory_space<vmem>>, vector<1x1x256xf32>
    %138 = vector.shape_cast %137 : vector<1x1x256xf32> to vector<1x256xf32>
    %139 = vector.broadcast %138 : vector<1x256xf32> to vector<16x256xf32>
    %140 = arith.addf %136, %139 : vector<16x256xf32>
    %141 = arith.mulf %140, %140 : vector<16x256xf32>
    %142 = arith.mulf %140, %141 : vector<16x256xf32>
    %cst_96 = arith.constant 4.471500e-02 : f32
    %143 = vector.broadcast %cst_96 : f32 to vector<16x256xf32>
    %144 = arith.mulf %143, %142 : vector<16x256xf32>
    %145 = arith.addf %140, %144 : vector<16x256xf32>
    %cst_97 = arith.constant 0.797884583 : f32
    %146 = vector.broadcast %cst_97 : f32 to vector<16x256xf32>
    %147 = arith.mulf %146, %145 : vector<16x256xf32>
    %148 = math.tanh %147 : vector<16x256xf32>
    %cst_98 = arith.constant 1.000000e+00 : f32
    %149 = vector.broadcast %cst_98 : f32 to vector<16x256xf32>
    %150 = arith.addf %149, %148 : vector<16x256xf32>
    %cst_99 = arith.constant 5.000000e-01 : f32
    %151 = vector.broadcast %cst_99 : f32 to vector<16x256xf32>
    %152 = arith.mulf %151, %150 : vector<16x256xf32>
    %153 = arith.mulf %140, %152 : vector<16x256xf32>
    %154 = arith.truncf %153 : vector<16x256xf32> to vector<16x256xbf16>
    %c0_100 = arith.constant 0 : index
    %c0_101 = arith.constant 0 : index
    %c0_102 = arith.constant 0 : index
    %155 = vector.load %arg17[%c0_100, %c0_101, %c0_102] : memref<1x256x128xbf16, #tpu.memory_space<vmem>>, vector<1x256x128xbf16>
    %156 = vector.shape_cast %155 : vector<1x256x128xbf16> to vector<256x128xbf16>
    %cst_103 = arith.constant dense<0.000000e+00> : vector<16x128xf32>
    %157 = tpu.matmul %154, %156, %cst_103 {dimension_numbers = #tpu.dot_dimension_numbers<[1], [0], [0], [1], [0, 0, 1, 1], [], []>} : vector<16x256xbf16>, vector<256x128xbf16>, vector<16x128xf32> -> vector<16x128xf32>
    %c0_104 = arith.constant 0 : index
    %c0_105 = arith.constant 0 : index
    %c0_106 = arith.constant 0 : index
    %158 = vector.load %arg18[%c0_104, %c0_105, %c0_106] : memref<1x1x128xf32, #tpu.memory_space<vmem>>, vector<1x1x128xf32>
    %159 = vector.shape_cast %158 : vector<1x1x128xf32> to vector<1x128xf32>
    %160 = vector.broadcast %159 : vector<1x128xf32> to vector<16x128xf32>
    %161 = arith.addf %157, %160 : vector<16x128xf32>
    %162 = arith.addf %161, %132 : vector<16x128xf32>
    %cst_107 = arith.constant dense<0.000000e+00> : vector<16xf32>
    %163 = vector.multi_reduction <add>, %162, %cst_107 [1] : vector<16x128xf32> to vector<16xf32>
    %164 = vector.shape_cast %163 : vector<16xf32> to vector<16x1xf32>
    %cst_108 = arith.constant 1.280000e+02 : f32
    %165 = vector.broadcast %cst_108 : f32 to vector<16x1xf32>
    %166 = arith.divf %164, %165 : vector<16x1xf32>
    %167 = vector.broadcast %166 : vector<16x1xf32> to vector<16x128xf32>
    %168 = arith.subf %162, %167 : vector<16x128xf32>
    %169 = arith.mulf %168, %168 : vector<16x128xf32>
    %cst_109 = arith.constant dense<0.000000e+00> : vector<16xf32>
    %170 = vector.multi_reduction <add>, %169, %cst_109 [1] : vector<16x128xf32> to vector<16xf32>
    %171 = vector.shape_cast %170 : vector<16xf32> to vector<16x1xf32>
    %cst_110 = arith.constant 1.280000e+02 : f32
    %172 = vector.broadcast %cst_110 : f32 to vector<16x1xf32>
    %173 = arith.divf %171, %172 : vector<16x1xf32>
    %cst_111 = arith.constant 9.99999996E-13 : f32
    %174 = vector.broadcast %cst_111 : f32 to vector<16x1xf32>
    %175 = arith.addf %173, %174 : vector<16x1xf32>
    %176 = math.rsqrt %175 : vector<16x1xf32>
    %177 = vector.broadcast %176 : vector<16x1xf32> to vector<16x128xf32>
    %178 = arith.mulf %168, %177 : vector<16x128xf32>
    %c0_112 = arith.constant 0 : index
    %c0_113 = arith.constant 0 : index
    %c0_114 = arith.constant 0 : index
    %179 = vector.load %arg19[%c0_112, %c0_113, %c0_114] : memref<1x1x128xf32, #tpu.memory_space<vmem>>, vector<1x1x128xf32>
    %180 = vector.shape_cast %179 : vector<1x1x128xf32> to vector<1x128xf32>
    %181 = vector.broadcast %180 : vector<1x128xf32> to vector<16x128xf32>
    %182 = arith.mulf %178, %181 : vector<16x128xf32>
    %c0_115 = arith.constant 0 : index
    %c0_116 = arith.constant 0 : index
    %c0_117 = arith.constant 0 : index
    %183 = vector.load %arg20[%c0_115, %c0_116, %c0_117] : memref<1x1x128xf32, #tpu.memory_space<vmem>>, vector<1x1x128xf32>
    %184 = vector.shape_cast %183 : vector<1x1x128xf32> to vector<1x128xf32>
    %185 = vector.broadcast %184 : vector<1x128xf32> to vector<16x128xf32>
    %186 = arith.addf %182, %185 : vector<16x128xf32>
    %187 = arith.truncf %186 : vector<16x128xf32> to vector<16x128xbf16>
    %c0_118 = arith.constant 0 : index
    %c0_119 = arith.constant 0 : index
    %188 = vector.load %arg26[%c0_118, %c0_119] : memref<16x128xbf16, #tpu.memory_space<vmem>>, vector<16x128xbf16>
    tpu.vector_store %arg26[%c0_118, %c0_119], %187 {strides = array<i32>} : memref<16x128xbf16, #tpu.memory_space<vmem>>, vector<16x128xbf16>,
    %c1_i32 = arith.constant 1 : i32
    %189 = arith.cmpi eq, %arg0, %c1_i32 : i32
    %190 = arith.extui %189 : i1 to i32
    %c0_i32_120 = arith.constant 0 : i32
    %191 = arith.cmpi ne, %190, %c0_i32_120 : i32
    scf.if %191 {
      %192 = arith.truncf %186 : vector<16x128xf32> to vector<16x128xbf16>
      %193 = vector.shape_cast %192 : vector<16x128xbf16> to vector<2x8x128xbf16>
      %194 = vector.extract_strided_slice %193 {offsets = [0, 0, 0], sizes = [2, 1, 128], strides = [1, 1, 1]} : vector<2x8x128xbf16> to vector<2x1x128xbf16>
      %195 = vector.shape_cast %194 : vector<2x1x128xbf16> to vector<2x128xbf16>
      %c0_121 = arith.constant 0 : index
      %c0_122 = arith.constant 0 : index
      %196 = vector.load %arg21[%c0_121, %c0_122] : memref<128x128xbf16, #tpu.memory_space<vmem>>, vector<128x128xbf16>
      %cst_123 = arith.constant dense<0.000000e+00> : vector<2x128xf32>
      %197 = tpu.matmul %195, %196, %cst_123 {dimension_numbers = #tpu.dot_dimension_numbers<[1], [0], [0], [1], [0, 0, 1, 1], [], []>} : vector<2x128xbf16>, vector<128x128xbf16>, vector<2x128xf32> -> vector<2x128xf32>
      %c0_124 = arith.constant 0 : index
      %c0_125 = arith.constant 0 : index
      %198 = vector.load %arg22[%c0_124, %c0_125] : memref<1x128xf32, #tpu.memory_space<vmem>>, vector<1x128xf32>
      %199 = vector.broadcast %198 : vector<1x128xf32> to vector<2x128xf32>
      %200 = arith.addf %197, %199 : vector<2x128xf32>
      %201 = math.tanh %200 : vector<2x128xf32>
      %202 = arith.truncf %201 : vector<2x128xf32> to vector<2x128xbf16>
      %c0_126 = arith.constant 0 : index
      %c0_127 = arith.constant 0 : index
      %203 = vector.load %arg23[%c0_126, %c0_127] : memref<128x128xbf16, #tpu.memory_space<vmem>>, vector<128x128xbf16>
      %cst_128 = arith.constant dense<0.000000e+00> : vector<2x128xf32>
      %204 = tpu.matmul %202, %203, %cst_128 {dimension_numbers = #tpu.dot_dimension_numbers<[1], [0], [0], [1], [0, 0, 1, 1], [], []>} : vector<2x128xbf16>, vector<128x128xbf16>, vector<2x128xf32> -> vector<2x128xf32>
      %c0_129 = arith.constant 0 : index
      %c0_130 = arith.constant 0 : index
      %205 = vector.load %arg24[%c0_129, %c0_130] : memref<1x128xf32, #tpu.memory_space<vmem>>, vector<1x128xf32>
      %206 = vector.broadcast %205 : vector<1x128xf32> to vector<2x128xf32>
      %207 = arith.addf %204, %206 : vector<2x128xf32>
      %c0_131 = arith.constant 0 : index
      %c0_132 = arith.constant 0 : index
      %208 = vector.load %arg25[%c0_131, %c0_132] : memref<2x128xf32, #tpu.memory_space<vmem>>, vector<2x128xf32>
      tpu.vector_store %arg25[%c0_131, %c0_132], %207 {strides = array<i32>} : memref<2x128xf32, #tpu.memory_space<vmem>>, vector<2x128xf32>,
    } else {
    }
    return
  }
  func.func @transform_0(%arg0: i32) -> (i32, i32) {
    %c0_i32 = arith.constant 0 : i32
    %c0_i32_0 = arith.constant 0 : i32
    %c0_i32_1 = arith.constant 0 : i32
    return %c0_i32, %c0_i32_0 : i32, i32
  }
  func.func @transform_1(%arg0: i32) -> (i32, i32) {
    %c0_i32 = arith.constant 0 : i32
    %c0_i32_0 = arith.constant 0 : i32
    %c0_i32_1 = arith.constant 0 : i32
    return %c0_i32, %c0_i32_0 : i32, i32
  }
  func.func @transform_2(%arg0: i32) -> (i32, i32) {
    %c0_i32 = arith.constant 0 : i32
    %c0_i32_0 = arith.constant 0 : i32
    %c0_i32_1 = arith.constant 0 : i32
    return %c0_i32, %c0_i32_0 : i32, i32
  }
  func.func @transform_3(%arg0: i32) -> (i32, i32) {
    %c0_i32 = arith.constant 0 : i32
    %c0_i32_0 = arith.constant 0 : i32
    %c0_i32_1 = arith.constant 0 : i32
    return %c0_i32, %c0_i32_0 : i32, i32
  }
  func.func @transform_4(%arg0: i32) -> (i32, i32, i32, i32) {
    %c0_i32 = arith.constant 0 : i32
    %c0_i32_0 = arith.constant 0 : i32
    %c0_i32_1 = arith.constant 0 : i32
    %c0_i32_2 = arith.constant 0 : i32
    return %arg0, %c0_i32, %c0_i32_0, %c0_i32_1 : i32, i32, i32, i32
  }
  func.func @transform_5(%arg0: i32) -> (i32, i32, i32, i32) {
    %c0_i32 = arith.constant 0 : i32
    %c0_i32_0 = arith.constant 0 : i32
    %c0_i32_1 = arith.constant 0 : i32
    %c0_i32_2 = arith.constant 0 : i32
    return %arg0, %c0_i32, %c0_i32_0, %c0_i32_1 : i32, i32, i32, i32
  }
  func.func @transform_6(%arg0: i32) -> (i32, i32, i32, i32) {
    %c0_i32 = arith.constant 0 : i32
    %c0_i32_0 = arith.constant 0 : i32
    %c0_i32_1 = arith.constant 0 : i32
    %c0_i32_2 = arith.constant 0 : i32
    return %arg0, %c0_i32, %c0_i32_0, %c0_i32_1 : i32, i32, i32, i32
  }
  func.func @transform_7(%arg0: i32) -> (i32, i32, i32, i32) {
    %c0_i32 = arith.constant 0 : i32
    %c0_i32_0 = arith.constant 0 : i32
    %c0_i32_1 = arith.constant 0 : i32
    %c0_i32_2 = arith.constant 0 : i32
    return %arg0, %c0_i32, %c0_i32_0, %c0_i32_1 : i32, i32, i32, i32
  }
  func.func @transform_8(%arg0: i32) -> (i32, i32, i32, i32) {
    %c0_i32 = arith.constant 0 : i32
    %c0_i32_0 = arith.constant 0 : i32
    %c0_i32_1 = arith.constant 0 : i32
    %c0_i32_2 = arith.constant 0 : i32
    return %arg0, %c0_i32, %c0_i32_0, %c0_i32_1 : i32, i32, i32, i32
  }
  func.func @transform_9(%arg0: i32) -> (i32, i32, i32, i32) {
    %c0_i32 = arith.constant 0 : i32
    %c0_i32_0 = arith.constant 0 : i32
    %c0_i32_1 = arith.constant 0 : i32
    %c0_i32_2 = arith.constant 0 : i32
    return %arg0, %c0_i32, %c0_i32_0, %c0_i32_1 : i32, i32, i32, i32
  }
  func.func @transform_10(%arg0: i32) -> (i32, i32, i32, i32) {
    %c0_i32 = arith.constant 0 : i32
    %c0_i32_0 = arith.constant 0 : i32
    %c0_i32_1 = arith.constant 0 : i32
    %c0_i32_2 = arith.constant 0 : i32
    return %arg0, %c0_i32, %c0_i32_0, %c0_i32_1 : i32, i32, i32, i32
  }
  func.func @transform_11(%arg0: i32) -> (i32, i32, i32) {
    %c0_i32 = arith.constant 0 : i32
    %c0_i32_0 = arith.constant 0 : i32
    %c0_i32_1 = arith.constant 0 : i32
    return %arg0, %c0_i32, %c0_i32_0 : i32, i32, i32
  }
  func.func @transform_12(%arg0: i32) -> (i32, i32, i32) {
    %c0_i32 = arith.constant 0 : i32
    %c0_i32_0 = arith.constant 0 : i32
    %c0_i32_1 = arith.constant 0 : i32
    return %arg0, %c0_i32, %c0_i32_0 : i32, i32, i32
  }
  func.func @transform_13(%arg0: i32) -> (i32, i32, i32) {
    %c0_i32 = arith.constant 0 : i32
    %c0_i32_0 = arith.constant 0 : i32
    %c0_i32_1 = arith.constant 0 : i32
    return %arg0, %c0_i32, %c0_i32_0 : i32, i32, i32
  }
  func.func @transform_14(%arg0: i32) -> (i32, i32, i32) {
    %c0_i32 = arith.constant 0 : i32
    %c0_i32_0 = arith.constant 0 : i32
    %c0_i32_1 = arith.constant 0 : i32
    return %arg0, %c0_i32, %c0_i32_0 : i32, i32, i32
  }
  func.func @transform_15(%arg0: i32) -> (i32, i32, i32) {
    %c0_i32 = arith.constant 0 : i32
    %c0_i32_0 = arith.constant 0 : i32
    %c0_i32_1 = arith.constant 0 : i32
    return %arg0, %c0_i32, %c0_i32_0 : i32, i32, i32
  }
  func.func @transform_16(%arg0: i32) -> (i32, i32, i32) {
    %c0_i32 = arith.constant 0 : i32
    %c0_i32_0 = arith.constant 0 : i32
    %c0_i32_1 = arith.constant 0 : i32
    return %arg0, %c0_i32, %c0_i32_0 : i32, i32, i32
  }
  func.func @transform_17(%arg0: i32) -> (i32, i32, i32) {
    %c0_i32 = arith.constant 0 : i32
    %c0_i32_0 = arith.constant 0 : i32
    %c0_i32_1 = arith.constant 0 : i32
    return %arg0, %c0_i32, %c0_i32_0 : i32, i32, i32
  }
  func.func @transform_18(%arg0: i32) -> (i32, i32, i32) {
    %c0_i32 = arith.constant 0 : i32
    %c0_i32_0 = arith.constant 0 : i32
    %c0_i32_1 = arith.constant 0 : i32
    return %arg0, %c0_i32, %c0_i32_0 : i32, i32, i32
  }
  func.func @transform_19(%arg0: i32) -> (i32, i32, i32) {
    %c0_i32 = arith.constant 0 : i32
    %c0_i32_0 = arith.constant 0 : i32
    %c0_i32_1 = arith.constant 0 : i32
    return %arg0, %c0_i32, %c0_i32_0 : i32, i32, i32
  }
  func.func @transform_20(%arg0: i32) -> (i32, i32) {
    %c0_i32 = arith.constant 0 : i32
    %c0_i32_0 = arith.constant 0 : i32
    %c0_i32_1 = arith.constant 0 : i32
    return %c0_i32, %c0_i32_0 : i32, i32
  }
  func.func @transform_21(%arg0: i32) -> (i32, i32) {
    %c0_i32 = arith.constant 0 : i32
    %c0_i32_0 = arith.constant 0 : i32
    %c0_i32_1 = arith.constant 0 : i32
    return %c0_i32, %c0_i32_0 : i32, i32
  }
  func.func @transform_22(%arg0: i32) -> (i32, i32) {
    %c0_i32 = arith.constant 0 : i32
    %c0_i32_0 = arith.constant 0 : i32
    %c0_i32_1 = arith.constant 0 : i32
    return %c0_i32, %c0_i32_0 : i32, i32
  }
  func.func @transform_23(%arg0: i32) -> (i32, i32) {
    %c0_i32 = arith.constant 0 : i32
    %c0_i32_0 = arith.constant 0 : i32
    %c0_i32_1 = arith.constant 0 : i32
    return %c0_i32, %c0_i32_0 : i32, i32
  }
  func.func @transform_24(%arg0: i32) -> (i32, i32) {
    %c0_i32 = arith.constant 0 : i32
    %c0_i32_0 = arith.constant 0 : i32
    %c0_i32_1 = arith.constant 0 : i32
    return %c0_i32, %c0_i32_0 : i32, i32
  }
}

</mosaic_0001>

<llo_original>
// kernel: _lambda_.1
$region0: #{_lambda_.1}
  #allocation0 [shape = 'u32[]', space=smem, size = 0x4, offset = 0x4, fixed_abs, tag = 'smem constant byte address 0x4 - core index']
  #allocation1 [shape = 'u32[72,128]{1,0:T(1,128)}', space=vmem, size = 0x9000, scoped, tag = 'internal scratch']
  #allocation2 [shape = 'bf16[16,128]{1,0:T(8,128)(2,1)}', space=vmem, size = 0x1000, scoped, tag = 'scratch operand']
  %s0 = inlined_call_operand.vmem [shape: f32[16,128], index: 0, kind: input, shape index: {}]
  %s1 = inlined_call_operand.vmem [shape: f32[2,8], index: 1, kind: input, shape index: {}]
  %s2 = inlined_call_operand.vmem [shape: f32[1,128], index: 2, kind: input, shape index: {}]
  %s3 = inlined_call_operand.vmem [shape: f32[1,128], index: 3, kind: input, shape index: {}]
  %s4 = inlined_call_operand.vmem [shape: bf16[2,2,128,64], index: 4, kind: input, shape index: {}]
  %s5 = inlined_call_operand.vmem [shape: f32[2,2,1,64], index: 5, kind: input, shape index: {}]
  %s6 = inlined_call_operand.vmem [shape: bf16[2,2,128,64], index: 6, kind: input, shape index: {}]
  %s7 = inlined_call_operand.vmem [shape: f32[2,2,1,64], index: 7, kind: input, shape index: {}]
  %s8 = inlined_call_operand.vmem [shape: bf16[2,2,128,64], index: 8, kind: input, shape index: {}]
  %s9 = inlined_call_operand.vmem [shape: f32[2,2,1,64], index: 9, kind: input, shape index: {}]
  %s10 = inlined_call_operand.vmem [shape: bf16[2,2,64,128], index: 10, kind: input, shape index: {}]
  %s11 = inlined_call_operand.vmem [shape: f32[2,1,128], index: 11, kind: input, shape index: {}]
  %s12 = inlined_call_operand.vmem [shape: f32[2,1,128], index: 12, kind: input, shape index: {}]
  %s13 = inlined_call_operand.vmem [shape: f32[2,1,128], index: 13, kind: input, shape index: {}]
  %s14 = inlined_call_operand.vmem [shape: bf16[2,128,256], index: 14, kind: input, shape index: {}]
  %s15 = inlined_call_operand.vmem [shape: f32[2,1,256], index: 15, kind: input, shape index: {}]
  %s16 = inlined_call_operand.vmem [shape: bf16[2,256,128], index: 16, kind: input, shape index: {}]
  %s17 = inlined_call_operand.vmem [shape: f32[2,1,128], index: 17, kind: input, shape index: {}]
  %s18 = inlined_call_operand.vmem [shape: f32[2,1,128], index: 18, kind: input, shape index: {}]
  %s19 = inlined_call_operand.vmem [shape: f32[2,1,128], index: 19, kind: input, shape index: {}]
  %s20 = inlined_call_operand.vmem [shape: bf16[128,128], index: 20, kind: input, shape index: {}]
  %s21 = inlined_call_operand.vmem [shape: f32[1,128], index: 21, kind: input, shape index: {}]
  %s22 = inlined_call_operand.vmem [shape: bf16[128,128], index: 22, kind: input, shape index: {}]
  %s23 = inlined_call_operand.vmem [shape: f32[1,128], index: 23, kind: input, shape index: {}]
  %s24 = inlined_call_operand.hbm [shape: f32[2,128], index: 24, kind: output, shape index: {}]
  %s25 = sld [smem:[#allocation0]]
  $region137: #{_lambda_.1} parent=0
    _
  %s27 = ssub.s32 1, %s25
  %s28 = scalar_select 0, %s27, %s25
  $region1: #{_lambda_.1} parent=0
    #allocation3 [shape = 'u8[1024]{0}', space=vmem, size = 0x400, scoped, tag = 'output window, operand 0, single buffered']
    #allocation4 [shape = 's32[2]{0}', space=sflag, size = 0x8, scoped, tag = 'scoped memory for _lambda_.1']
    %29 = vsyncpa [#allocation4], 0
    loop: start=0, step=1, limit=4
    $region2: #{_lambda_.1} parent=1 // loop_pre_header
      _
    $region3: #{_lambda_.1} parent=1 // loop_header
      %s31 = sphi 0, %s35
      %p32 = scmp.ge.s32.totalorder %s31, 4
      %s39 = sphi 0, %s39
      %s41 = sphi 0, %s39
      %s42 = sphi 0, %s41
      %s56 = sphi 0, %s42
      %s60 = sphi 0, %s60
      %s62 = sphi 0, %s60
      %s63 = sphi 0, %s62
      %s77 = sphi 0, %s63
      %s81 = sphi 0, %s81
      %s83 = sphi 0, %s81
      %s84 = sphi 0, %s83
      %s98 = sphi 0, %s84
      %s102 = sphi 0, %s102
      %s104 = sphi 0, %s102
      %s105 = sphi 0, %s104
      %s119 = sphi 0, %s105
      %s125 = sphi 0, %s127
      %s128 = sphi 0, %s125
      %s129 = sphi 0, %s128
      %s145 = sphi 0, %s129
      %s151 = sphi 0, %s153
      %s154 = sphi 0, %s151
      %s155 = sphi 0, %s154
      %s171 = sphi 0, %s155
      %s177 = sphi 0, %s179
      %s180 = sphi 0, %s177
      %s181 = sphi 0, %s180
      %s197 = sphi 0, %s181
      %s203 = sphi 0, %s205
      %s206 = sphi 0, %s203
      %s207 = sphi 0, %s206
      %s223 = sphi 0, %s207
      %s229 = sphi 0, %s231
      %s232 = sphi 0, %s229
      %s233 = sphi 0, %s232
      %s249 = sphi 0, %s233
      %s255 = sphi 0, %s257
      %s258 = sphi 0, %s255
      %s259 = sphi 0, %s258
      %s275 = sphi 0, %s259
      %s281 = sphi 0, %s283
      %s284 = sphi 0, %s281
      %s285 = sphi 0, %s284
      %s301 = sphi 0, %s285
      %s307 = sphi 0, %s309
      %s310 = sphi 0, %s307
      %s311 = sphi 0, %s310
      %s327 = sphi 0, %s311
      %s333 = sphi 0, %s335
      %s336 = sphi 0, %s333
      %s337 = sphi 0, %s336
      %s353 = sphi 0, %s337
      %s359 = sphi 0, %s361
      %s362 = sphi 0, %s359
      %s363 = sphi 0, %s362
      %s379 = sphi 0, %s363
      %s385 = sphi 0, %s387
      %s388 = sphi 0, %s385
      %s389 = sphi 0, %s388
      %s405 = sphi 0, %s389
      %s411 = sphi 0, %s413
      %s414 = sphi 0, %s411
      %s415 = sphi 0, %s414
      %s431 = sphi 0, %s415
      %s437 = sphi 0, %s439
      %s440 = sphi 0, %s437
      %s441 = sphi 0, %s440
      %s457 = sphi 0, %s441
      %s463 = sphi 0, %s465
      %s466 = sphi 0, %s463
      %s467 = sphi 0, %s466
      %s483 = sphi 0, %s467
      %s489 = sphi 0, %s491
      %s492 = sphi 0, %s489
      %s493 = sphi 0, %s492
      %s509 = sphi 0, %s493
      %s515 = sphi 0, %s517
      %s518 = sphi 0, %s515
      %s519 = sphi 0, %s518
      %s535 = sphi 0, %s519
      %s539 = sphi 0, %s539
      %s541 = sphi 0, %s539
      %s542 = sphi 0, %s541
      %s556 = sphi 0, %s542
      %s560 = sphi 0, %s560
      %s562 = sphi 0, %s560
      %s563 = sphi 0, %s562
      %s577 = sphi 0, %s563
      %s581 = sphi 0, %s581
      %s583 = sphi 0, %s581
      %s584 = sphi 0, %s583
      %s598 = sphi 0, %s584
      %s602 = sphi 0, %s602
      %s604 = sphi 0, %s602
      %s605 = sphi 0, %s604
      %s619 = sphi 0, %s605
      %s623 = sphi 0, %s623
      %s625 = sphi 0, %s623
      %s626 = sphi 0, %s625
      %s640 = sphi 0, %s626
    $region4: #{_lambda_.1} parent=1 // loop_header_branch
      %34 = sbr.rel (%p32) target = $region8
    $region5: #{_lambda_.1} parent=1 // loop_body
      %s36 = ssub.s32 %s31, 1
      %s37 = ssub.s32 %s31, 2
      %s38 = sadd.s32 %s31, 1
      %s40 = sadd.s32 %s39, 1
      %p43 = scmp.eq.s32.totalorder %s31, 1
      %p44 = scmp.ne.s32.totalorder %s39, %s41
      %p45 = scmp.eq.s32.totalorder %s31, 0
      %p46 = por %p44, %p45
      %p47 = scmp.ne.s32.totalorder %s39, %s41
      %p48 = scmp.eq.s32.totalorder %s36, 1
      %p49 = por %p47, %p48
      %p50 = scmp.ne.s32.totalorder %s41, %s42
      %p51 = scmp.eq.s32.totalorder %s36, 0
      %p52 = por %p50, %p51
      %p53 = scmp.ne.s32.totalorder %s41, %s42
      %p54 = scmp.eq.s32.totalorder %s37, 1
      %p55 = por %p53, %p54
      %p57 = scmp.ne.s32.totalorder %s42, %s56
      %p58 = scmp.eq.s32.totalorder %s37, 0
      %p59 = por %p57, %p58
      %s61 = sadd.s32 %s60, 1
      %p64 = scmp.eq.s32.totalorder %s31, 1
      %p65 = scmp.ne.s32.totalorder %s60, %s62
      %p66 = scmp.eq.s32.totalorder %s31, 0
      %p67 = por %p65, %p66
      %p68 = scmp.ne.s32.totalorder %s60, %s62
      %p69 = scmp.eq.s32.totalorder %s36, 1
      %p70 = por %p68, %p69
      %p71 = scmp.ne.s32.totalorder %s62, %s63
      %p72 = scmp.eq.s32.totalorder %s36, 0
      %p73 = por %p71, %p72
      %p74 = scmp.ne.s32.totalorder %s62, %s63
      %p75 = scmp.eq.s32.totalorder %s37, 1
      %p76 = por %p74, %p75
      %p78 = scmp.ne.s32.totalorder %s63, %s77
      %p79 = scmp.eq.s32.totalorder %s37, 0
      %p80 = por %p78, %p79
      %s82 = sadd.s32 %s81, 1
      %p85 = scmp.eq.s32.totalorder %s31, 1
      %p86 = scmp.ne.s32.totalorder %s81, %s83
      %p87 = scmp.eq.s32.totalorder %s31, 0
      %p88 = por %p86, %p87
      %p89 = scmp.ne.s32.totalorder %s81, %s83
      %p90 = scmp.eq.s32.totalorder %s36, 1
      %p91 = por %p89, %p90
      %p92 = scmp.ne.s32.totalorder %s83, %s84
      %p93 = scmp.eq.s32.totalorder %s36, 0
      %p94 = por %p92, %p93
      %p95 = scmp.ne.s32.totalorder %s83, %s84
      %p96 = scmp.eq.s32.totalorder %s37, 1
      %p97 = por %p95, %p96
      %p99 = scmp.ne.s32.totalorder %s84, %s98
      %p100 = scmp.eq.s32.totalorder %s37, 0
      %p101 = por %p99, %p100
      %s103 = sadd.s32 %s102, 1
      %p106 = scmp.eq.s32.totalorder %s31, 1
      %p107 = scmp.ne.s32.totalorder %s102, %s104
      %p108 = scmp.eq.s32.totalorder %s31, 0
      %p109 = por %p107, %p108
      %p110 = scmp.ne.s32.totalorder %s102, %s104
      %p111 = scmp.eq.s32.totalorder %s36, 1
      %p112 = por %p110, %p111
      %p113 = scmp.ne.s32.totalorder %s104, %s105
      %p114 = scmp.eq.s32.totalorder %s36, 0
      %p115 = por %p113, %p114
      %p116 = scmp.ne.s32.totalorder %s104, %s105
      %p117 = scmp.eq.s32.totalorder %s37, 1
      %p118 = por %p116, %p117
      %p120 = scmp.ne.s32.totalorder %s105, %s119
      %p121 = scmp.eq.s32.totalorder %s37, 0
      %p122 = por %p120, %p121
      %s123 = ssub.s32 %s31, %s38
      %p124 = scmp.eq.s32.totalorder %s123, 0
      %s126 = sadd.s32 %s125, 1
      %s127 = scalar_select %p124, %s125, %s126
      %p130 = pneg %p124
      %p131 = scmp.eq.s32.totalorder %s31, 1
      %p132 = por %p130, %p131
      %p133 = scmp.ne.s32.totalorder %s125, %s128
      %p134 = scmp.eq.s32.totalorder %s31, 0
      %p135 = por %p133, %p134
      %p136 = scmp.ne.s32.totalorder %s125, %s128
      %p137 = scmp.eq.s32.totalorder %s36, 1
      %p138 = por %p136, %p137
      %p139 = scmp.ne.s32.totalorder %s128, %s129
      %p140 = scmp.eq.s32.totalorder %s36, 0
      %p141 = por %p139, %p140
      %p142 = scmp.ne.s32.totalorder %s128, %s129
      %p143 = scmp.eq.s32.totalorder %s37, 1
      %p144 = por %p142, %p143
      %p146 = scmp.ne.s32.totalorder %s129, %s145
      %p147 = scmp.eq.s32.totalorder %s37, 0
      %p148 = por %p146, %p147
      %s149 = ssub.s32 %s31, %s38
      %p150 = scmp.eq.s32.totalorder %s149, 0
      %s152 = sadd.s32 %s151, 1
      %s153 = scalar_select %p150, %s151, %s152
      %p156 = pneg %p150
      %p157 = scmp.eq.s32.totalorder %s31, 1
      %p158 = por %p156, %p157
      %p159 = scmp.ne.s32.totalorder %s151, %s154
      %p160 = scmp.eq.s32.totalorder %s31, 0
      %p161 = por %p159, %p160
      %p162 = scmp.ne.s32.totalorder %s151, %s154
      %p163 = scmp.eq.s32.totalorder %s36, 1
      %p164 = por %p162, %p163
      %p165 = scmp.ne.s32.totalorder %s154, %s155
      %p166 = scmp.eq.s32.totalorder %s36, 0
      %p167 = por %p165, %p166
      %p168 = scmp.ne.s32.totalorder %s154, %s155
      %p169 = scmp.eq.s32.totalorder %s37, 1
      %p170 = por %p168, %p169
      %p172 = scmp.ne.s32.totalorder %s155, %s171
      %p173 = scmp.eq.s32.totalorder %s37, 0
      %p174 = por %p172, %p173
      %s175 = ssub.s32 %s31, %s38
      %p176 = scmp.eq.s32.totalorder %s175, 0
      %s178 = sadd.s32 %s177, 1
      %s179 = scalar_select %p176, %s177, %s178
      %p182 = pneg %p176
      %p183 = scmp.eq.s32.totalorder %s31, 1
      %p184 = por %p182, %p183
      %p185 = scmp.ne.s32.totalorder %s177, %s180
      %p186 = scmp.eq.s32.totalorder %s31, 0
      %p187 = por %p185, %p186
      %p188 = scmp.ne.s32.totalorder %s177, %s180
      %p189 = scmp.eq.s32.totalorder %s36, 1
      %p190 = por %p188, %p189
      %p191 = scmp.ne.s32.totalorder %s180, %s181
      %p192 = scmp.eq.s32.totalorder %s36, 0
      %p193 = por %p191, %p192
      %p194 = scmp.ne.s32.totalorder %s180, %s181
      %p195 = scmp.eq.s32.totalorder %s37, 1
      %p196 = por %p194, %p195
      %p198 = scmp.ne.s32.totalorder %s181, %s197
      %p199 = scmp.eq.s32.totalorder %s37, 0
      %p200 = por %p198, %p199
      %s201 = ssub.s32 %s31, %s38
      %p202 = scmp.eq.s32.totalorder %s201, 0
      %s204 = sadd.s32 %s203, 1
      %s205 = scalar_select %p202, %s203, %s204
      %p208 = pneg %p202
      %p209 = scmp.eq.s32.totalorder %s31, 1
      %p210 = por %p208, %p209
      %p211 = scmp.ne.s32.totalorder %s203, %s206
      %p212 = scmp.eq.s32.totalorder %s31, 0
      %p213 = por %p211, %p212
      %p214 = scmp.ne.s32.totalorder %s203, %s206
      %p215 = scmp.eq.s32.totalorder %s36, 1
      %p216 = por %p214, %p215
      %p217 = scmp.ne.s32.totalorder %s206, %s207
      %p218 = scmp.eq.s32.totalorder %s36, 0
      %p219 = por %p217, %p218
      %p220 = scmp.ne.s32.totalorder %s206, %s207
      %p221 = scmp.eq.s32.totalorder %s37, 1
      %p222 = por %p220, %p221
      %p224 = scmp.ne.s32.totalorder %s207, %s223
      %p225 = scmp.eq.s32.totalorder %s37, 0
      %p226 = por %p224, %p225
      %s227 = ssub.s32 %s31, %s38
      %p228 = scmp.eq.s32.totalorder %s227, 0
      %s230 = sadd.s32 %s229, 1
      %s231 = scalar_select %p228, %s229, %s230
      %p234 = pneg %p228
      %p235 = scmp.eq.s32.totalorder %s31, 1
      %p236 = por %p234, %p235
      %p237 = scmp.ne.s32.totalorder %s229, %s232
      %p238 = scmp.eq.s32.totalorder %s31, 0
      %p239 = por %p237, %p238
      %p240 = scmp.ne.s32.totalorder %s229, %s232
      %p241 = scmp.eq.s32.totalorder %s36, 1
      %p242 = por %p240, %p241
      %p243 = scmp.ne.s32.totalorder %s232, %s233
      %p244 = scmp.eq.s32.totalorder %s36, 0
      %p245 = por %p243, %p244
      %p246 = scmp.ne.s32.totalorder %s232, %s233
      %p247 = scmp.eq.s32.totalorder %s37, 1
      %p248 = por %p246, %p247
      %p250 = scmp.ne.s32.totalorder %s233, %s249
      %p251 = scmp.eq.s32.totalorder %s37, 0
      %p252 = por %p250, %p251
      %s253 = ssub.s32 %s31, %s38
      %p254 = scmp.eq.s32.totalorder %s253, 0
      %s256 = sadd.s32 %s255, 1
      %s257 = scalar_select %p254, %s255, %s256
      %p260 = pneg %p254
      %p261 = scmp.eq.s32.totalorder %s31, 1
      %p262 = por %p260, %p261
      %p263 = scmp.ne.s32.totalorder %s255, %s258
      %p264 = scmp.eq.s32.totalorder %s31, 0
      %p265 = por %p263, %p264
      %p266 = scmp.ne.s32.totalorder %s255, %s258
      %p267 = scmp.eq.s32.totalorder %s36, 1
      %p268 = por %p266, %p267
      %p269 = scmp.ne.s32.totalorder %s258, %s259
      %p270 = scmp.eq.s32.totalorder %s36, 0
      %p271 = por %p269, %p270
      %p272 = scmp.ne.s32.totalorder %s258, %s259
      %p273 = scmp.eq.s32.totalorder %s37, 1
      %p274 = por %p272, %p273
      %p276 = scmp.ne.s32.totalorder %s259, %s275
      %p277 = scmp.eq.s32.totalorder %s37, 0
      %p278 = por %p276, %p277
      %s279 = ssub.s32 %s31, %s38
      %p280 = scmp.eq.s32.totalorder %s279, 0
      %s282 = sadd.s32 %s281, 1
      %s283 = scalar_select %p280, %s281, %s282
      %p286 = pneg %p280
      %p287 = scmp.eq.s32.totalorder %s31, 1
      %p288 = por %p286, %p287
      %p289 = scmp.ne.s32.totalorder %s281, %s284
      %p290 = scmp.eq.s32.totalorder %s31, 0
      %p291 = por %p289, %p290
      %p292 = scmp.ne.s32.totalorder %s281, %s284
      %p293 = scmp.eq.s32.totalorder %s36, 1
      %p294 = por %p292, %p293
      %p295 = scmp.ne.s32.totalorder %s284, %s285
      %p296 = scmp.eq.s32.totalorder %s36, 0
      %p297 = por %p295, %p296
      %p298 = scmp.ne.s32.totalorder %s284, %s285
      %p299 = scmp.eq.s32.totalorder %s37, 1
      %p300 = por %p298, %p299
      %p302 = scmp.ne.s32.totalorder %s285, %s301
      %p303 = scmp.eq.s32.totalorder %s37, 0
      %p304 = por %p302, %p303
      %s305 = ssub.s32 %s31, %s38
      %p306 = scmp.eq.s32.totalorder %s305, 0
      %s308 = sadd.s32 %s307, 1
      %s309 = scalar_select %p306, %s307, %s308
      %p312 = pneg %p306
      %p313 = scmp.eq.s32.totalorder %s31, 1
      %p314 = por %p312, %p313
      %p315 = scmp.ne.s32.totalorder %s307, %s310
      %p316 = scmp.eq.s32.totalorder %s31, 0
      %p317 = por %p315, %p316
      %p318 = scmp.ne.s32.totalorder %s307, %s310
      %p319 = scmp.eq.s32.totalorder %s36, 1
      %p320 = por %p318, %p319
      %p321 = scmp.ne.s32.totalorder %s310, %s311
      %p322 = scmp.eq.s32.totalorder %s36, 0
      %p323 = por %p321, %p322
      %p324 = scmp.ne.s32.totalorder %s310, %s311
      %p325 = scmp.eq.s32.totalorder %s37, 1
      %p326 = por %p324, %p325
      %p328 = scmp.ne.s32.totalorder %s311, %s327
      %p329 = scmp.eq.s32.totalorder %s37, 0
      %p330 = por %p328, %p329
      %s331 = ssub.s32 %s31, %s38
      %p332 = scmp.eq.s32.totalorder %s331, 0
      %s334 = sadd.s32 %s333, 1
      %s335 = scalar_select %p332, %s333, %s334
      %p338 = pneg %p332
      %p339 = scmp.eq.s32.totalorder %s31, 1
      %p340 = por %p338, %p339
      %p341 = scmp.ne.s32.totalorder %s333, %s336
      %p342 = scmp.eq.s32.totalorder %s31, 0
      %p343 = por %p341, %p342
      %p344 = scmp.ne.s32.totalorder %s333, %s336
      %p345 = scmp.eq.s32.totalorder %s36, 1
      %p346 = por %p344, %p345
      %p347 = scmp.ne.s32.totalorder %s336, %s337
      %p348 = scmp.eq.s32.totalorder %s36, 0
      %p349 = por %p347, %p348
      %p350 = scmp.ne.s32.totalorder %s336, %s337
      %p351 = scmp.eq.s32.totalorder %s37, 1
      %p352 = por %p350, %p351
      %p354 = scmp.ne.s32.totalorder %s337, %s353
      %p355 = scmp.eq.s32.totalorder %s37, 0
      %p356 = por %p354, %p355
      %s357 = ssub.s32 %s31, %s38
      %p358 = scmp.eq.s32.totalorder %s357, 0
      %s360 = sadd.s32 %s359, 1
      %s361 = scalar_select %p358, %s359, %s360
      %p364 = pneg %p358
      %p365 = scmp.eq.s32.totalorder %s31, 1
      %p366 = por %p364, %p365
      %p367 = scmp.ne.s32.totalorder %s359, %s362
      %p368 = scmp.eq.s32.totalorder %s31, 0
      %p369 = por %p367, %p368
      %p370 = scmp.ne.s32.totalorder %s359, %s362
      %p371 = scmp.eq.s32.totalorder %s36, 1
      %p372 = por %p370, %p371
      %p373 = scmp.ne.s32.totalorder %s362, %s363
      %p374 = scmp.eq.s32.totalorder %s36, 0
      %p375 = por %p373, %p374
      %p376 = scmp.ne.s32.totalorder %s362, %s363
      %p377 = scmp.eq.s32.totalorder %s37, 1
      %p378 = por %p376, %p377
      %p380 = scmp.ne.s32.totalorder %s363, %s379
      %p381 = scmp.eq.s32.totalorder %s37, 0
      %p382 = por %p380, %p381
      %s383 = ssub.s32 %s31, %s38
      %p384 = scmp.eq.s32.totalorder %s383, 0
      %s386 = sadd.s32 %s385, 1
      %s387 = scalar_select %p384, %s385, %s386
      %p390 = pneg %p384
      %p391 = scmp.eq.s32.totalorder %s31, 1
      %p392 = por %p390, %p391
      %p393 = scmp.ne.s32.totalorder %s385, %s388
      %p394 = scmp.eq.s32.totalorder %s31, 0
      %p395 = por %p393, %p394
      %p396 = scmp.ne.s32.totalorder %s385, %s388
      %p397 = scmp.eq.s32.totalorder %s36, 1
      %p398 = por %p396, %p397
      %p399 = scmp.ne.s32.totalorder %s388, %s389
      %p400 = scmp.eq.s32.totalorder %s36, 0
      %p401 = por %p399, %p400
      %p402 = scmp.ne.s32.totalorder %s388, %s389
      %p403 = scmp.eq.s32.totalorder %s37, 1
      %p404 = por %p402, %p403
      %p406 = scmp.ne.s32.totalorder %s389, %s405
      %p407 = scmp.eq.s32.totalorder %s37, 0
      %p408 = por %p406, %p407
      %s409 = ssub.s32 %s31, %s38
      %p410 = scmp.eq.s32.totalorder %s409, 0
      %s412 = sadd.s32 %s411, 1
      %s413 = scalar_select %p410, %s411, %s412
      %p416 = pneg %p410
      %p417 = scmp.eq.s32.totalorder %s31, 1
      %p418 = por %p416, %p417
      %p419 = scmp.ne.s32.totalorder %s411, %s414
      %p420 = scmp.eq.s32.totalorder %s31, 0
      %p421 = por %p419, %p420
      %p422 = scmp.ne.s32.totalorder %s411, %s414
      %p423 = scmp.eq.s32.totalorder %s36, 1
      %p424 = por %p422, %p423
      %p425 = scmp.ne.s32.totalorder %s414, %s415
      %p426 = scmp.eq.s32.totalorder %s36, 0
      %p427 = por %p425, %p426
      %p428 = scmp.ne.s32.totalorder %s414, %s415
      %p429 = scmp.eq.s32.totalorder %s37, 1
      %p430 = por %p428, %p429
      %p432 = scmp.ne.s32.totalorder %s415, %s431
      %p433 = scmp.eq.s32.totalorder %s37, 0
      %p434 = por %p432, %p433
      %s435 = ssub.s32 %s31, %s38
      %p436 = scmp.eq.s32.totalorder %s435, 0
      %s438 = sadd.s32 %s437, 1
      %s439 = scalar_select %p436, %s437, %s438
      %p442 = pneg %p436
      %p443 = scmp.eq.s32.totalorder %s31, 1
      %p444 = por %p442, %p443
      %p445 = scmp.ne.s32.totalorder %s437, %s440
      %p446 = scmp.eq.s32.totalorder %s31, 0
      %p447 = por %p445, %p446
      %p448 = scmp.ne.s32.totalorder %s437, %s440
      %p449 = scmp.eq.s32.totalorder %s36, 1
      %p450 = por %p448, %p449
      %p451 = scmp.ne.s32.totalorder %s440, %s441
      %p452 = scmp.eq.s32.totalorder %s36, 0
      %p453 = por %p451, %p452
      %p454 = scmp.ne.s32.totalorder %s440, %s441
      %p455 = scmp.eq.s32.totalorder %s37, 1
      %p456 = por %p454, %p455
      %p458 = scmp.ne.s32.totalorder %s441, %s457
      %p459 = scmp.eq.s32.totalorder %s37, 0
      %p460 = por %p458, %p459
      %s461 = ssub.s32 %s31, %s38
      %p462 = scmp.eq.s32.totalorder %s461, 0
      %s464 = sadd.s32 %s463, 1
      %s465 = scalar_select %p462, %s463, %s464
      %p468 = pneg %p462
      %p469 = scmp.eq.s32.totalorder %s31, 1
      %p470 = por %p468, %p469
      %p471 = scmp.ne.s32.totalorder %s463, %s466
      %p472 = scmp.eq.s32.totalorder %s31, 0
      %p473 = por %p471, %p472
      %p474 = scmp.ne.s32.totalorder %s463, %s466
      %p475 = scmp.eq.s32.totalorder %s36, 1
      %p476 = por %p474, %p475
      %p477 = scmp.ne.s32.totalorder %s466, %s467
      %p478 = scmp.eq.s32.totalorder %s36, 0
      %p479 = por %p477, %p478
      %p480 = scmp.ne.s32.totalorder %s466, %s467
      %p481 = scmp.eq.s32.totalorder %s37, 1
      %p482 = por %p480, %p481
      %p484 = scmp.ne.s32.totalorder %s467, %s483
      %p485 = scmp.eq.s32.totalorder %s37, 0
      %p486 = por %p484, %p485
      %s487 = ssub.s32 %s31, %s38
      %p488 = scmp.eq.s32.totalorder %s487, 0
      %s490 = sadd.s32 %s489, 1
      %s491 = scalar_select %p488, %s489, %s490
      %p494 = pneg %p488
      %p495 = scmp.eq.s32.totalorder %s31, 1
      %p496 = por %p494, %p495
      %p497 = scmp.ne.s32.totalorder %s489, %s492
      %p498 = scmp.eq.s32.totalorder %s31, 0
      %p499 = por %p497, %p498
      %p500 = scmp.ne.s32.totalorder %s489, %s492
      %p501 = scmp.eq.s32.totalorder %s36, 1
      %p502 = por %p500, %p501
      %p503 = scmp.ne.s32.totalorder %s492, %s493
      %p504 = scmp.eq.s32.totalorder %s36, 0
      %p505 = por %p503, %p504
      %p506 = scmp.ne.s32.totalorder %s492, %s493
      %p507 = scmp.eq.s32.totalorder %s37, 1
      %p508 = por %p506, %p507
      %p510 = scmp.ne.s32.totalorder %s493, %s509
      %p511 = scmp.eq.s32.totalorder %s37, 0
      %p512 = por %p510, %p511
      %s513 = ssub.s32 %s31, %s38
      %p514 = scmp.eq.s32.totalorder %s513, 0
      %s516 = sadd.s32 %s515, 1
      %s517 = scalar_select %p514, %s515, %s516
      %p520 = pneg %p514
      %p521 = scmp.eq.s32.totalorder %s31, 1
      %p522 = por %p520, %p521
      %p523 = scmp.ne.s32.totalorder %s515, %s518
      %p524 = scmp.eq.s32.totalorder %s31, 0
      %p525 = por %p523, %p524
      %p526 = scmp.ne.s32.totalorder %s515, %s518
      %p527 = scmp.eq.s32.totalorder %s36, 1
      %p528 = por %p526, %p527
      %p529 = scmp.ne.s32.totalorder %s518, %s519
      %p530 = scmp.eq.s32.totalorder %s36, 0
      %p531 = por %p529, %p530
      %p532 = scmp.ne.s32.totalorder %s518, %s519
      %p533 = scmp.eq.s32.totalorder %s37, 1
      %p534 = por %p532, %p533
      %p536 = scmp.ne.s32.totalorder %s519, %s535
      %p537 = scmp.eq.s32.totalorder %s37, 0
      %p538 = por %p536, %p537
      %s540 = sadd.s32 %s539, 1
      %p543 = scmp.eq.s32.totalorder %s31, 1
      %p544 = scmp.ne.s32.totalorder %s539, %s541
      %p545 = scmp.eq.s32.totalorder %s31, 0
      %p546 = por %p544, %p545
      %p547 = scmp.ne.s32.totalorder %s539, %s541
      %p548 = scmp.eq.s32.totalorder %s36, 1
      %p549 = por %p547, %p548
      %p550 = scmp.ne.s32.totalorder %s541, %s542
      %p551 = scmp.eq.s32.totalorder %s36, 0
      %p552 = por %p550, %p551
      %p553 = scmp.ne.s32.totalorder %s541, %s542
      %p554 = scmp.eq.s32.totalorder %s37, 1
      %p555 = por %p553, %p554
      %p557 = scmp.ne.s32.totalorder %s542, %s556
      %p558 = scmp.eq.s32.totalorder %s37, 0
      %p559 = por %p557, %p558
      %s561 = sadd.s32 %s560, 1
      %p564 = scmp.eq.s32.totalorder %s31, 1
      %p565 = scmp.ne.s32.totalorder %s560, %s562
      %p566 = scmp.eq.s32.totalorder %s31, 0
      %p567 = por %p565, %p566
      %p568 = scmp.ne.s32.totalorder %s560, %s562
      %p569 = scmp.eq.s32.totalorder %s36, 1
      %p570 = por %p568, %p569
      %p571 = scmp.ne.s32.totalorder %s562, %s563
      %p572 = scmp.eq.s32.totalorder %s36, 0
      %p573 = por %p571, %p572
      %p574 = scmp.ne.s32.totalorder %s562, %s563
      %p575 = scmp.eq.s32.totalorder %s37, 1
      %p576 = por %p574, %p575
      %p578 = scmp.ne.s32.totalorder %s563, %s577
      %p579 = scmp.eq.s32.totalorder %s37, 0
      %p580 = por %p578, %p579
      %s582 = sadd.s32 %s581, 1
      %p585 = scmp.eq.s32.totalorder %s31, 1
      %p586 = scmp.ne.s32.totalorder %s581, %s583
      %p587 = scmp.eq.s32.totalorder %s31, 0
      %p588 = por %p586, %p587
      %p589 = scmp.ne.s32.totalorder %s581, %s583
      %p590 = scmp.eq.s32.totalorder %s36, 1
      %p591 = por %p589, %p590
      %p592 = scmp.ne.s32.totalorder %s583, %s584
      %p593 = scmp.eq.s32.totalorder %s36, 0
      %p594 = por %p592, %p593
      %p595 = scmp.ne.s32.totalorder %s583, %s584
      %p596 = scmp.eq.s32.totalorder %s37, 1
      %p597 = por %p595, %p596
      %p599 = scmp.ne.s32.totalorder %s584, %s598
      %p600 = scmp.eq.s32.totalorder %s37, 0
      %p601 = por %p599, %p600
      %s603 = sadd.s32 %s602, 1
      %p606 = scmp.eq.s32.totalorder %s31, 1
      %p607 = scmp.ne.s32.totalorder %s602, %s604
      %p608 = scmp.eq.s32.totalorder %s31, 0
      %p609 = por %p607, %p608
      %p610 = scmp.ne.s32.totalorder %s602, %s604
      %p611 = scmp.eq.s32.totalorder %s36, 1
      %p612 = por %p610, %p611
      %p613 = scmp.ne.s32.totalorder %s604, %s605
      %p614 = scmp.eq.s32.totalorder %s36, 0
      %p615 = por %p613, %p614
      %p616 = scmp.ne.s32.totalorder %s604, %s605
      %p617 = scmp.eq.s32.totalorder %s37, 1
      %p618 = por %p616, %p617
      %p620 = scmp.ne.s32.totalorder %s605, %s619
      %p621 = scmp.eq.s32.totalorder %s37, 0
      %p622 = por %p620, %p621
      %s624 = sadd.s32 %s623, 1
      %p627 = scmp.eq.s32.totalorder %s31, 1
      %p628 = scmp.ne.s32.totalorder %s623, %s625
      %p629 = scmp.eq.s32.totalorder %s31, 0
      %p630 = por %p628, %p629
      %p631 = scmp.ne.s32.totalorder %s623, %s625
      %p632 = scmp.eq.s32.totalorder %s36, 1
      %p633 = por %p631, %p632
      %p634 = scmp.ne.s32.totalorder %s625, %s626
      %p635 = scmp.eq.s32.totalorder %s36, 0
      %p636 = por %p634, %p635
      %p637 = scmp.ne.s32.totalorder %s625, %s626
      %p638 = scmp.eq.s32.totalorder %s37, 1
      %p639 = por %p637, %p638
      %p641 = scmp.ne.s32.totalorder %s626, %s640
      %p642 = scmp.eq.s32.totalorder %s37, 0
      %p643 = por %p641, %p642
      %p644 = scmp.le.s32.totalorder 1, %s31
      %p645 = scmp.lt.s32.totalorder %s31, 3
      %p646 = pnand %p644, %p645
      %p647 = pneg %p646
      // Predicated region
      $region9: #{_lambda_.1} parent=5 // pred_check
        _
      $region10: #{_lambda_.1} parent=5 // pred_check_branch
        %649 = sbr.rel (%p646) target = $region12
      $region11: #{_lambda_.1} parent=5 // pred_region
        %s650 = ssub.s32 %s31, 1
        // Predicated region
        $region13: #{_lambda_.1} parent=11 // pred_check
          %p651 = pneg %p52
        $region14: #{_lambda_.1} parent=11 // pred_check_branch
          %653 = sbr.rel (%p651) target = $region16
        $region15: #{_lambda_.1} parent=11 // pred_region
          _
        $region16: #{_lambda_.1} parent=11 // pred_fallthru
          _
        // Predicated region
        $region17: #{_lambda_.1} parent=11 // pred_check
          %p654 = pneg %p73
        $region18: #{_lambda_.1} parent=11 // pred_check_branch
          %656 = sbr.rel (%p654) target = $region20
        $region19: #{_lambda_.1} parent=11 // pred_region
          _
        $region20: #{_lambda_.1} parent=11 // pred_fallthru
          _
        // Predicated region
        $region21: #{_lambda_.1} parent=11 // pred_check
          %p657 = pneg %p94
        $region22: #{_lambda_.1} parent=11 // pred_check_branch
          %659 = sbr.rel (%p657) target = $region24
        $region23: #{_lambda_.1} parent=11 // pred_region
          _
        $region24: #{_lambda_.1} parent=11 // pred_fallthru
          _
        // Predicated region
        $region25: #{_lambda_.1} parent=11 // pred_check
          %p660 = pneg %p115
        $region26: #{_lambda_.1} parent=11 // pred_check_branch
          %662 = sbr.rel (%p660) target = $region28
        $region27: #{_lambda_.1} parent=11 // pred_region
          _
        $region28: #{_lambda_.1} parent=11 // pred_fallthru
          _
        // Predicated region
        $region29: #{_lambda_.1} parent=11 // pred_check
          %p663 = pneg %p552
        $region30: #{_lambda_.1} parent=11 // pred_check_branch
          %665 = sbr.rel (%p663) target = $region32
        $region31: #{_lambda_.1} parent=11 // pred_region
          _
        $region32: #{_lambda_.1} parent=11 // pred_fallthru
          _
        // Predicated region
        $region33: #{_lambda_.1} parent=11 // pred_check
          %p666 = pneg %p573
        $region34: #{_lambda_.1} parent=11 // pred_check_branch
          %668 = sbr.rel (%p666) target = $region36
        $region35: #{_lambda_.1} parent=11 // pred_region
          _
        $region36: #{_lambda_.1} parent=11 // pred_fallthru
          _
        // Predicated region
        $region37: #{_lambda_.1} parent=11 // pred_check
          %p669 = pneg %p594
        $region38: #{_lambda_.1} parent=11 // pred_check_branch
          %671 = sbr.rel (%p669) target = $region40
        $region39: #{_lambda_.1} parent=11 // pred_region
          _
        $region40: #{_lambda_.1} parent=11 // pred_fallthru
          _
        // Predicated region
        $region41: #{_lambda_.1} parent=11 // pred_check
          %p672 = pneg %p615
        $region42: #{_lambda_.1} parent=11 // pred_check_branch
          %674 = sbr.rel (%p672) target = $region44
        $region43: #{_lambda_.1} parent=11 // pred_region
          _
        $region44: #{_lambda_.1} parent=11 // pred_fallthru
          _
      $region12: #{_lambda_.1} parent=5 // pred_fallthru
        _
      %p675 = scmp.lt.s32.totalorder %s31, 2
      // Predicated region
      $region45: #{_lambda_.1} parent=5 // pred_check
        %p676 = pneg %p675
      $region46: #{_lambda_.1} parent=5 // pred_check_branch
        %678 = sbr.rel (%p676) target = $region48
      $region47: #{_lambda_.1} parent=5 // pred_region
        // Predicated region
        $region49: #{_lambda_.1} parent=47 // pred_check
          %p679 = pneg %p135
        $region50: #{_lambda_.1} parent=47 // pred_check_branch
          %681 = sbr.rel (%p679) target = $region52
        $region51: #{_lambda_.1} parent=47 // pred_region
          %p682 = scmp.lt.s32.totalorder %s31, 1
          %s683 = scalar_select %p682, %s31, 1
          %s684 = smul.addr %s683, 32
          %s685 = smul.addr %s684, 4
          %s686 = scalar_lea.vmem %s4, %s685
        $region52: #{_lambda_.1} parent=47 // pred_fallthru
          _
        // Predicated region
        $region53: #{_lambda_.1} parent=47 // pred_check
          %p687 = pneg %p161
        $region54: #{_lambda_.1} parent=47 // pred_check_branch
          %689 = sbr.rel (%p687) target = $region56
        $region55: #{_lambda_.1} parent=47 // pred_region
          %p690 = scmp.lt.s32.totalorder %s31, 1
          %s691 = scalar_select %p690, %s31, 1
          %s692 = smul.addr %s691, 2
          %s693 = scalar_lea.vmem %s5, %s692
        $region56: #{_lambda_.1} parent=47 // pred_fallthru
          _
        // Predicated region
        $region57: #{_lambda_.1} parent=47 // pred_check
          %p694 = pneg %p187
        $region58: #{_lambda_.1} parent=47 // pred_check_branch
          %696 = sbr.rel (%p694) target = $region60
        $region59: #{_lambda_.1} parent=47 // pred_region
          %p697 = scmp.lt.s32.totalorder %s31, 1
          %s698 = scalar_select %p697, %s31, 1
          %s699 = smul.addr %s698, 32
          %s700 = smul.addr %s699, 4
          %s701 = scalar_lea.vmem %s6, %s700
        $region60: #{_lambda_.1} parent=47 // pred_fallthru
          _
        // Predicated region
        $region61: #{_lambda_.1} parent=47 // pred_check
          %p702 = pneg %p213
        $region62: #{_lambda_.1} parent=47 // pred_check_branch
          %704 = sbr.rel (%p702) target = $region64
        $region63: #{_lambda_.1} parent=47 // pred_region
          %p705 = scmp.lt.s32.totalorder %s31, 1
          %s706 = scalar_select %p705, %s31, 1
          %s707 = smul.addr %s706, 2
          %s708 = scalar_lea.vmem %s7, %s707
        $region64: #{_lambda_.1} parent=47 // pred_fallthru
          _
        // Predicated region
        $region65: #{_lambda_.1} parent=47 // pred_check
          %p709 = pneg %p239
        $region66: #{_lambda_.1} parent=47 // pred_check_branch
          %711 = sbr.rel (%p709) target = $region68
        $region67: #{_lambda_.1} parent=47 // pred_region
          %p712 = scmp.lt.s32.totalorder %s31, 1
          %s713 = scalar_select %p712, %s31, 1
          %s714 = smul.addr %s713, 32
          %s715 = smul.addr %s714, 4
          %s716 = scalar_lea.vmem %s8, %s715
        $region68: #{_lambda_.1} parent=47 // pred_fallthru
          _
        // Predicated region
        $region69: #{_lambda_.1} parent=47 // pred_check
          %p717 = pneg %p265
        $region70: #{_lambda_.1} parent=47 // pred_check_branch
          %719 = sbr.rel (%p717) target = $region72
        $region71: #{_lambda_.1} parent=47 // pred_region
          %p720 = scmp.lt.s32.totalorder %s31, 1
          %s721 = scalar_select %p720, %s31, 1
          %s722 = smul.addr %s721, 2
          %s723 = scalar_lea.vmem %s9, %s722
        $region72: #{_lambda_.1} parent=47 // pred_fallthru
          _
        // Predicated region
        $region73: #{_lambda_.1} parent=47 // pred_check
          %p724 = pneg %p291
        $region74: #{_lambda_.1} parent=47 // pred_check_branch
          %726 = sbr.rel (%p724) target = $region76
        $region75: #{_lambda_.1} parent=47 // pred_region
          %p727 = scmp.lt.s32.totalorder %s31, 1
          %s728 = scalar_select %p727, %s31, 1
          %s729 = smul.addr %s728, 16
          %s730 = smul.addr %s729, 4
          %s731 = scalar_lea.vmem %s10, %s730
        $region76: #{_lambda_.1} parent=47 // pred_fallthru
          _
        // Predicated region
        $region77: #{_lambda_.1} parent=47 // pred_check
          %p732 = pneg %p317
        $region78: #{_lambda_.1} parent=47 // pred_check_branch
          %734 = sbr.rel (%p732) target = $region80
        $region79: #{_lambda_.1} parent=47 // pred_region
          %p735 = scmp.lt.s32.totalorder %s31, 1
          %s736 = scalar_select %p735, %s31, 1
          %s737 = scalar_lea.vmem %s11, %s736
        $region80: #{_lambda_.1} parent=47 // pred_fallthru
          _
        // Predicated region
        $region81: #{_lambda_.1} parent=47 // pred_check
          %p738 = pneg %p343
        $region82: #{_lambda_.1} parent=47 // pred_check_branch
          %740 = sbr.rel (%p738) target = $region84
        $region83: #{_lambda_.1} parent=47 // pred_region
          %p741 = scmp.lt.s32.totalorder %s31, 1
          %s742 = scalar_select %p741, %s31, 1
          %s743 = scalar_lea.vmem %s12, %s742
        $region84: #{_lambda_.1} parent=47 // pred_fallthru
          _
        // Predicated region
        $region85: #{_lambda_.1} parent=47 // pred_check
          %p744 = pneg %p369
        $region86: #{_lambda_.1} parent=47 // pred_check_branch
          %746 = sbr.rel (%p744) target = $region88
        $region87: #{_lambda_.1} parent=47 // pred_region
          %p747 = scmp.lt.s32.totalorder %s31, 1
          %s748 = scalar_select %p747, %s31, 1
          %s749 = scalar_lea.vmem %s13, %s748
        $region88: #{_lambda_.1} parent=47 // pred_fallthru
          _
        // Predicated region
        $region89: #{_lambda_.1} parent=47 // pred_check
          %p750 = pneg %p395
        $region90: #{_lambda_.1} parent=47 // pred_check_branch
          %752 = sbr.rel (%p750) target = $region92
        $region91: #{_lambda_.1} parent=47 // pred_region
          %p753 = scmp.lt.s32.totalorder %s31, 1
          %s754 = scalar_select %p753, %s31, 1
          %s755 = smul.addr %s754, 32
          %s756 = smul.addr %s755, 4
          %s757 = scalar_lea.vmem %s14, %s756
        $region92: #{_lambda_.1} parent=47 // pred_fallthru
          _
        // Predicated region
        $region93: #{_lambda_.1} parent=47 // pred_check
          %p758 = pneg %p421
        $region94: #{_lambda_.1} parent=47 // pred_check_branch
          %760 = sbr.rel (%p758) target = $region96
        $region95: #{_lambda_.1} parent=47 // pred_region
          %p761 = scmp.lt.s32.totalorder %s31, 1
          %s762 = scalar_select %p761, %s31, 1
          %s763 = smul.addr %s762, 2
          %s764 = scalar_lea.vmem %s15, %s763
        $region96: #{_lambda_.1} parent=47 // pred_fallthru
          _
        // Predicated region
        $region97: #{_lambda_.1} parent=47 // pred_check
          %p765 = pneg %p447
        $region98: #{_lambda_.1} parent=47 // pred_check_branch
          %767 = sbr.rel (%p765) target = $region100
        $region99: #{_lambda_.1} parent=47 // pred_region
          %p768 = scmp.lt.s32.totalorder %s31, 1
          %s769 = scalar_select %p768, %s31, 1
          %s770 = smul.addr %s769, 32
          %s771 = smul.addr %s770, 4
          %s772 = scalar_lea.vmem %s16, %s771
        $region100: #{_lambda_.1} parent=47 // pred_fallthru
          _
        // Predicated region
        $region101: #{_lambda_.1} parent=47 // pred_check
          %p773 = pneg %p473
        $region102: #{_lambda_.1} parent=47 // pred_check_branch
          %775 = sbr.rel (%p773) target = $region104
        $region103: #{_lambda_.1} parent=47 // pred_region
          %p776 = scmp.lt.s32.totalorder %s31, 1
          %s777 = scalar_select %p776, %s31, 1
          %s778 = scalar_lea.vmem %s17, %s777
        $region104: #{_lambda_.1} parent=47 // pred_fallthru
          _
        // Predicated region
        $region105: #{_lambda_.1} parent=47 // pred_check
          %p779 = pneg %p499
        $region106: #{_lambda_.1} parent=47 // pred_check_branch
          %781 = sbr.rel (%p779) target = $region108
        $region107: #{_lambda_.1} parent=47 // pred_region
          %p782 = scmp.lt.s32.totalorder %s31, 1
          %s783 = scalar_select %p782, %s31, 1
          %s784 = scalar_lea.vmem %s18, %s783
        $region108: #{_lambda_.1} parent=47 // pred_fallthru
          _
        // Predicated region
        $region109: #{_lambda_.1} parent=47 // pred_check
          %p785 = pneg %p525
        $region110: #{_lambda_.1} parent=47 // pred_check_branch
          %787 = sbr.rel (%p785) target = $region112
        $region111: #{_lambda_.1} parent=47 // pred_region
          %p788 = scmp.lt.s32.totalorder %s31, 1
          %s789 = scalar_select %p788, %s31, 1
          %s790 = scalar_lea.vmem %s19, %s789
        $region112: #{_lambda_.1} parent=47 // pred_fallthru
          _
      $region48: #{_lambda_.1} parent=5 // pred_fallthru
        _
      %p791 = scmp.le.s32.totalorder 1, %s31
      %p792 = scmp.lt.s32.totalorder %s31, 3
      %p793 = pnand %p791, %p792
      %p794 = pneg %p793
      // Predicated region
      $region113: #{_lambda_.1} parent=5 // pred_check
        _
      $region114: #{_lambda_.1} parent=5 // pred_check_branch
        %796 = sbr.rel (%p793) target = $region116
      $region115: #{_lambda_.1} parent=5 // pred_region
        %s797 = ssub.s32 %s31, 1
        %p798 = pneg %p52
        %p799 = pneg %p49
        %p800 = pneg %p73
        %p801 = pneg %p70
        %p802 = pneg %p94
        %p803 = pneg %p91
        %p804 = pneg %p115
        %p805 = pneg %p112
        %p806 = scmp.lt.s32.totalorder %s36, 1
        %s807 = scalar_select %p806, %s36, 1
        %s808 = smul.addr %s807, 32
        %s809 = smul.addr %s808, 4
        %s810 = scalar_lea.vmem %s4, %s809
        %p811 = pneg %p141
        %p812 = pneg %p138
        %p813 = scmp.lt.s32.totalorder %s36, 1
        %s814 = scalar_select %p813, %s36, 1
        %s815 = smul.addr %s814, 2
        %s816 = scalar_lea.vmem %s5, %s815
        %p817 = pneg %p167
        %p818 = pneg %p164
        %p819 = scmp.lt.s32.totalorder %s36, 1
        %s820 = scalar_select %p819, %s36, 1
        %s821 = smul.addr %s820, 32
        %s822 = smul.addr %s821, 4
        %s823 = scalar_lea.vmem %s6, %s822
        %p824 = pneg %p193
        %p825 = pneg %p190
        %p826 = scmp.lt.s32.totalorder %s36, 1
        %s827 = scalar_select %p826, %s36, 1
        %s828 = smul.addr %s827, 2
        %s829 = scalar_lea.vmem %s7, %s828
        %p830 = pneg %p219
        %p831 = pneg %p216
        %p832 = scmp.lt.s32.totalorder %s36, 1
        %s833 = scalar_select %p832, %s36, 1
        %s834 = smul.addr %s833, 32
        %s835 = smul.addr %s834, 4
        %s836 = scalar_lea.vmem %s8, %s835
        %p837 = pneg %p245
        %p838 = pneg %p242
        %p839 = scmp.lt.s32.totalorder %s36, 1
        %s840 = scalar_select %p839, %s36, 1
        %s841 = smul.addr %s840, 2
        %s842 = scalar_lea.vmem %s9, %s841
        %p843 = pneg %p271
        %p844 = pneg %p268
        %p845 = scmp.lt.s32.totalorder %s36, 1
        %s846 = scalar_select %p845, %s36, 1
        %s847 = smul.addr %s846, 16
        %s848 = smul.addr %s847, 4
        %s849 = scalar_lea.vmem %s10, %s848
        %p850 = pneg %p297
        %p851 = pneg %p294
        %p852 = scmp.lt.s32.totalorder %s36, 1
        %s853 = scalar_select %p852, %s36, 1
        %s854 = scalar_lea.vmem %s11, %s853
        %p855 = pneg %p323
        %p856 = pneg %p320
        %p857 = scmp.lt.s32.totalorder %s36, 1
        %s858 = scalar_select %p857, %s36, 1
        %s859 = scalar_lea.vmem %s12, %s858
        %p860 = pneg %p349
        %p861 = pneg %p346
        %p862 = scmp.lt.s32.totalorder %s36, 1
        %s863 = scalar_select %p862, %s36, 1
        %s864 = scalar_lea.vmem %s13, %s863
        %p865 = pneg %p375
        %p866 = pneg %p372
        %p867 = scmp.lt.s32.totalorder %s36, 1
        %s868 = scalar_select %p867, %s36, 1
        %s869 = smul.addr %s868, 32
        %s870 = smul.addr %s869, 4
        %s871 = scalar_lea.vmem %s14, %s870
        %p872 = pneg %p401
        %p873 = pneg %p398
        %p874 = scmp.lt.s32.totalorder %s36, 1
        %s875 = scalar_select %p874, %s36, 1
        %s876 = smul.addr %s875, 2
        %s877 = scalar_lea.vmem %s15, %s876
        %p878 = pneg %p427
        %p879 = pneg %p424
        %p880 = scmp.lt.s32.totalorder %s36, 1
        %s881 = scalar_select %p880, %s36, 1
        %s882 = smul.addr %s881, 32
        %s883 = smul.addr %s882, 4
        %s884 = scalar_lea.vmem %s16, %s883
        %p885 = pneg %p453
        %p886 = pneg %p450
        %p887 = scmp.lt.s32.totalorder %s36, 1
        %s888 = scalar_select %p887, %s36, 1
        %s889 = scalar_lea.vmem %s17, %s888
        %p890 = pneg %p479
        %p891 = pneg %p476
        %p892 = scmp.lt.s32.totalorder %s36, 1
        %s893 = scalar_select %p892, %s36, 1
        %s894 = scalar_lea.vmem %s18, %s893
        %p895 = pneg %p505
        %p896 = pneg %p502
        %p897 = scmp.lt.s32.totalorder %s36, 1
        %s898 = scalar_select %p897, %s36, 1
        %s899 = scalar_lea.vmem %s19, %s898
        %p900 = pneg %p531
        %p901 = pneg %p528
        %p902 = pneg %p552
        %p903 = pneg %p549
        %p904 = pneg %p573
        %p905 = pneg %p570
        %p906 = pneg %p594
        %p907 = pneg %p591
        %p908 = pneg %p615
        %p909 = pneg %p612
        %p910 = pneg %p636
        %p911 = pneg %p633
        %p912 = scmp.lt.s32.totalorder %s36, 1
        %s913 = scalar_select %p912, %s36, 1
        %s914 = smul.addr %s913, 32
        %s915 = smul.addr %s914, 4
        %s916 = scalar_lea.vmem %s4, %s915
        %p917 = scmp.lt.s32.totalorder %s36, 1
        %s918 = scalar_select %p917, %s36, 1
        %s919 = smul.addr %s918, 2
        %s920 = scalar_lea.vmem %s5, %s919
        %p921 = scmp.lt.s32.totalorder %s36, 1
        %s922 = scalar_select %p921, %s36, 1
        %s923 = smul.addr %s922, 32
        %s924 = smul.addr %s923, 4
        %s925 = scalar_lea.vmem %s6, %s924
        %p926 = scmp.lt.s32.totalorder %s36, 1
        %s927 = scalar_select %p926, %s36, 1
        %s928 = smul.addr %s927, 2
        %s929 = scalar_lea.vmem %s7, %s928
        %p930 = scmp.lt.s32.totalorder %s36, 1
        %s931 = scalar_select %p930, %s36, 1
        %s932 = smul.addr %s931, 32
        %s933 = smul.addr %s932, 4
        %s934 = scalar_lea.vmem %s8, %s933
        %p935 = scmp.lt.s32.totalorder %s36, 1
        %s936 = scalar_select %p935, %s36, 1
        %s937 = smul.addr %s936, 2
        %s938 = scalar_lea.vmem %s9, %s937
        %p939 = scmp.lt.s32.totalorder %s36, 1
        %s940 = scalar_select %p939, %s36, 1
        %s941 = smul.addr %s940, 16
        %s942 = smul.addr %s941, 4
        %s943 = scalar_lea.vmem %s10, %s942
        %p944 = scmp.lt.s32.totalorder %s36, 1
        %s945 = scalar_select %p944, %s36, 1
        %s946 = scalar_lea.vmem %s11, %s945
        %p947 = scmp.lt.s32.totalorder %s36, 1
        %s948 = scalar_select %p947, %s36, 1
        %s949 = scalar_lea.vmem %s12, %s948
        %p950 = scmp.lt.s32.totalorder %s36, 1
        %s951 = scalar_select %p950, %s36, 1
        %s952 = scalar_lea.vmem %s13, %s951
        %p953 = scmp.lt.s32.totalorder %s36, 1
        %s954 = scalar_select %p953, %s36, 1
        %s955 = smul.addr %s954, 32
        %s956 = smul.addr %s955, 4
        %s957 = scalar_lea.vmem %s14, %s956
        %p958 = scmp.lt.s32.totalorder %s36, 1
        %s959 = scalar_select %p958, %s36, 1
        %s960 = smul.addr %s959, 2
        %s961 = scalar_lea.vmem %s15, %s960
        %p962 = scmp.lt.s32.totalorder %s36, 1
        %s963 = scalar_select %p962, %s36, 1
        %s964 = smul.addr %s963, 32
        %s965 = smul.addr %s964, 4
        %s966 = scalar_lea.vmem %s16, %s965
        %p967 = scmp.lt.s32.totalorder %s36, 1
        %s968 = scalar_select %p967, %s36, 1
        %s969 = scalar_lea.vmem %s17, %s968
        %p970 = scmp.lt.s32.totalorder %s36, 1
        %s971 = scalar_select %p970, %s36, 1
        %s972 = scalar_lea.vmem %s18, %s971
        %p973 = scmp.lt.s32.totalorder %s36, 1
        %s974 = scalar_select %p973, %s36, 1
        %s975 = scalar_lea.vmem %s19, %s974
        %p977 = scmp.eq.s32.totalorder %s36, 0
        // Predicated region
        $region117: #{_lambda_.1} parent=115 // pred_check
          %p978 = pneg %p977
        $region118: #{_lambda_.1} parent=115 // pred_check_branch
          %980 = sbr.rel (%p978) target = $region120
        $region119: #{_lambda_.1} parent=115 // pred_region
          %v981 = vld [vmem:[%s0] sm:$0xff]
          %v982 = vld [vmem:[%s0 + $0x8] sm:$0xff]
          %983 = vadd.xlane.f32.xlu0 %v981
          %v984 = vpop.xlane.xlu0 %983
          %985 = vadd.xlane.f32.xlu0 %v982
          %v986 = vpop.xlane.xlu0 %985
          %v987 = vrcp.pop 128.0
          %v988 = vmul.f32 128.0, %v987
          %v989 = vsub.f32 1.0, %v988
          %v990 = vmul.f32 %v987, %v989
          %v991 = vadd.f32 %v987, %v990
          %vm992 = vweird.f32 %v987
          %v993 = vsel %vm992, %v987, %v991
          %v994 = vmul.f32 %v984, %v993
          %v995 = vmul.f32 %v986, %v993
          %v996 = vsub.f32 %v981, %v994
          %v997 = vsub.f32 %v982, %v995
          %v998 = vmul.f32 %v996, %v996
          %v999 = vmul.f32 %v997, %v997
          %1000 = vadd.xlane.f32.xlu0 %v998
          %v1001 = vpop.xlane.xlu0 %1000
          %1002 = vadd.xlane.f32.xlu0 %v999
          %v1003 = vpop.xlane.xlu0 %1002
          %v1004 = vmul.f32 %v1001, %v993
          %v1005 = vmul.f32 %v1003, %v993
          %v1006 = vadd.f32 %v1004, 1e-12
          %v1007 = vadd.f32 %v1005, 1e-12
          %v1008 = vrsqrt.pop %v1006
          %v1009 = vmul.f32 %v1008, %v1006
          %v1010 = vmul.f32 %v1009, %v1008
          %v1011 = vmul.f32 0.5, %v1010
          %v1012 = vsub.f32 1.5, %v1011
          %v1013 = vmul.f32 %v1008, %v1012
          %vm1014 = vweird.f32 %v1006
          %vm1015 = vweird.f32 %v1008
          %vm1016 = vmor %vm1014, %vm1015
          %v1017 = vsel %vm1016, %v1008, %v1013
          %v1018 = vrsqrt.pop %v1007
          %v1019 = vmul.f32 %v1018, %v1007
          %v1020 = vmul.f32 %v1019, %v1018
          %v1021 = vmul.f32 0.5, %v1020
          %v1022 = vsub.f32 1.5, %v1021
          %v1023 = vmul.f32 %v1018, %v1022
          %vm1024 = vweird.f32 %v1007
          %vm1025 = vweird.f32 %v1018
          %vm1026 = vmor %vm1024, %vm1025
          %v1027 = vsel %vm1026, %v1018, %v1023
          %v1028 = vmul.f32 %v996, %v1017
          %v1029 = vmul.f32 %v997, %v1027
          %v1030 = vld [vmem:[%s2] sm:$0x1]
          %v1032 = vperm.slane %v1030, 0
          %v1034 = vmul.f32 %v1028, %v1032
          %v1035 = vmul.f32 %v1029, %v1032
          %v1036 = vld [vmem:[%s3] sm:$0x1]
          %v1038 = vperm.slane %v1036, 0
          %v1040 = vadd.f32 %v1034, %v1038
          %v1041 = vadd.f32 %v1035, %v1038
          %v1042 = vpack.c.bf16 %v1040, %v1040
          %v1043 = vpack.c.bf16 %v1041, %v1041
          %1044 = vst [vmem:[#allocation2] sm:$0xf] %v1042
          %1045 = vst [vmem:[#allocation2 + $0x4] sm:$0xf] %v1043
        $region120: #{_lambda_.1} parent=115 // pred_fallthru
          _
        %v1046 = vld [vmem:[#allocation2] sm:$0xf]
        %v1047 = vld [vmem:[#allocation2 + $0x4] sm:$0xf]
        %v1048 = vunpack.c.l.bf16 %v1046
        %v1049 = vunpack.c.l.bf16 %v1047
        %v1050 = vld [vmem:[%s1] sm:$0x3]
        %v1052 = vrot.slane %v1050, 1
        %v1053 = vld [vmem:[%s916] sm:$0xf]
        %v1054 = vld [vmem:[%s916 + $0x4] sm:$0xf]
        %v1055 = vld [vmem:[%s916 + $0x8] sm:$0xf]
        %v1056 = vld [vmem:[%s916 + $0xc] sm:$0xf]
        %v1057 = vld [vmem:[%s916 + $0x10] sm:$0xf]
        %v1058 = vld [vmem:[%s916 + $0x14] sm:$0xf]
        %v1059 = vld [vmem:[%s916 + $0x18] sm:$0xf]
        %v1060 = vld [vmem:[%s916 + $0x1c] sm:$0xf]
        %v1061 = vld [vmem:[%s916 + $0x20] sm:$0xf]
        %v1062 = vld [vmem:[%s916 + $0x24] sm:$0xf]
        %v1063 = vld [vmem:[%s916 + $0x28] sm:$0xf]
        %v1064 = vld [vmem:[%s916 + $0x2c] sm:$0xf]
        %v1065 = vld [vmem:[%s916 + $0x30] sm:$0xf]
        %v1066 = vld [vmem:[%s916 + $0x34] sm:$0xf]
        %v1067 = vld [vmem:[%s916 + $0x38] sm:$0xf]
        %v1068 = vld [vmem:[%s916 + $0x3c] sm:$0xf]
        %v1069 = vld [vmem:[%s920] sm:$0x1]
        %v1071 = vperm.slane %v1069, 0
        %v1075 = vunpack.c.l.b16 %v1046
        %v1076 = vunpack.c.l.b16 %v1047
        %v1077 = vpack.c.b16 %v1076, %v1075
        %v1095 = vunpack.c.l.b16 %v1053
        %v1096 = vunpack.c.l.b16 %v1054
        %v1097 = vunpack.c.l.b16 %v1055
        %v1098 = vunpack.c.l.b16 %v1056
        %v1099 = vunpack.c.l.b16 %v1057
        %v1100 = vunpack.c.l.b16 %v1058
        %v1101 = vunpack.c.l.b16 %v1059
        %v1102 = vunpack.c.l.b16 %v1060
        %v1103 = vunpack.c.l.b16 %v1061
        %v1104 = vunpack.c.l.b16 %v1062
        %v1105 = vunpack.c.l.b16 %v1063
        %v1106 = vunpack.c.l.b16 %v1064
        %v1107 = vunpack.c.l.b16 %v1065
        %v1108 = vunpack.c.l.b16 %v1066
        %v1109 = vunpack.c.l.b16 %v1067
        %v1110 = vunpack.c.l.b16 %v1068
        %v1111 = vpack.c.b16 %v1096, %v1095
        %v1112 = vpack.c.b16 %v1098, %v1097
        %v1113 = vpack.c.b16 %v1100, %v1099
        %v1114 = vpack.c.b16 %v1102, %v1101
        %v1115 = vpack.c.b16 %v1104, %v1103
        %v1116 = vpack.c.b16 %v1106, %v1105
        %v1117 = vpack.c.b16 %v1108, %v1107
        %v1118 = vpack.c.b16 %v1110, %v1109
        %1127 = vmatpush.bf16.msra.mxu0 %v1118
        %1128 = vmatpush.bf16.msra.mxu0 %v1117
        %1129 = vmatpush.bf16.msra.mxu0 %v1116
        %1130 = vmatpush.bf16.msra.mxu0 %v1115
        %1131 = vmatpush.bf16.msra.mxu0 %v1114
        %1132 = vmatpush.bf16.msra.mxu0 %v1113
        %1133 = vmatpush.bf16.msra.mxu0 %v1112
        %1134 = vmatpush.bf16.msra.mxu0 %v1111
        %1135 = vmatmul.bf16.gmra.mxu0 %v1077
        %v1136 = vpop.f32.mrf.mxu0
        %v1137 = vadd.f32 %v1071, %v1136
        %v1138 = vpop.f32.mrf.mxu0
        %v1139 = vadd.f32 %v1071, %v1138
        %1140 = vdwg.mxu0
        %v1141 = vld [vmem:[%s925] sm:$0xf]
        %v1142 = vld [vmem:[%s925 + $0x4] sm:$0xf]
        %v1143 = vld [vmem:[%s925 + $0x8] sm:$0xf]
        %v1144 = vld [vmem:[%s925 + $0xc] sm:$0xf]
        %v1145 = vld [vmem:[%s925 + $0x10] sm:$0xf]
        %v1146 = vld [vmem:[%s925 + $0x14] sm:$0xf]
        %v1147 = vld [vmem:[%s925 + $0x18] sm:$0xf]
        %v1148 = vld [vmem:[%s925 + $0x1c] sm:$0xf]
        %v1149 = vld [vmem:[%s925 + $0x20] sm:$0xf]
        %v1150 = vld [vmem:[%s925 + $0x24] sm:$0xf]
        %v1151 = vld [vmem:[%s925 + $0x28] sm:$0xf]
        %v1152 = vld [vmem:[%s925 + $0x2c] sm:$0xf]
        %v1153 = vld [vmem:[%s925 + $0x30] sm:$0xf]
        %v1154 = vld [vmem:[%s925 + $0x34] sm:$0xf]
        %v1155 = vld [vmem:[%s925 + $0x38] sm:$0xf]
        %v1156 = vld [vmem:[%s925 + $0x3c] sm:$0xf]
        %v1157 = vld [vmem:[%s929] sm:$0x1]
        %v1159 = vperm.slane %v1157, 0
        %v1177 = vunpack.c.l.b16 %v1141
        %v1178 = vunpack.c.l.b16 %v1142
        %v1179 = vunpack.c.l.b16 %v1143
        %v1180 = vunpack.c.l.b16 %v1144
        %v1181 = vunpack.c.l.b16 %v1145
        %v1182 = vunpack.c.l.b16 %v1146
        %v1183 = vunpack.c.l.b16 %v1147
        %v1184 = vunpack.c.l.b16 %v1148
        %v1185 = vunpack.c.l.b16 %v1149
        %v1186 = vunpack.c.l.b16 %v1150
        %v1187 = vunpack.c.l.b16 %v1151
        %v1188 = vunpack.c.l.b16 %v1152
        %v1189 = vunpack.c.l.b16 %v1153
        %v1190 = vunpack.c.l.b16 %v1154
        %v1191 = vunpack.c.l.b16 %v1155
        %v1192 = vunpack.c.l.b16 %v1156
        %v1193 = vpack.c.b16 %v1178, %v1177
        %v1194 = vpack.c.b16 %v1180, %v1179
        %v1195 = vpack.c.b16 %v1182, %v1181
        %v1196 = vpack.c.b16 %v1184, %v1183
        %v1197 = vpack.c.b16 %v1186, %v1185
        %v1198 = vpack.c.b16 %v1188, %v1187
        %v1199 = vpack.c.b16 %v1190, %v1189
        %v1200 = vpack.c.b16 %v1192, %v1191
        %1209 = vmatpush.bf16.msra.mxu0 %v1200
        %1210 = vmatpush.bf16.msra.mxu0 %v1199
        %1211 = vmatpush.bf16.msra.mxu0 %v1198
        %1212 = vmatpush.bf16.msra.mxu0 %v1197
        %1213 = vmatpush.bf16.msra.mxu0 %v1196
        %1214 = vmatpush.bf16.msra.mxu0 %v1195
        %1215 = vmatpush.bf16.msra.mxu0 %v1194
        %1216 = vmatpush.bf16.msra.mxu0 %v1193
        %1217 = vmatmul.bf16.gmra.mxu0 %v1077
        %v1218 = vpop.f32.mrf.mxu0
        %v1219 = vadd.f32 %v1159, %v1218
        %v1220 = vpop.f32.mrf.mxu0
        %v1221 = vadd.f32 %v1159, %v1220
        %1222 = vdwg.mxu0
        %v1223 = vld [vmem:[%s934] sm:$0xf]
        %v1224 = vld [vmem:[%s934 + $0x4] sm:$0xf]
        %v1225 = vld [vmem:[%s934 + $0x8] sm:$0xf]
        %v1226 = vld [vmem:[%s934 + $0xc] sm:$0xf]
        %v1227 = vld [vmem:[%s934 + $0x10] sm:$0xf]
        %v1228 = vld [vmem:[%s934 + $0x14] sm:$0xf]
        %v1229 = vld [vmem:[%s934 + $0x18] sm:$0xf]
        %v1230 = vld [vmem:[%s934 + $0x1c] sm:$0xf]
        %v1231 = vld [vmem:[%s934 + $0x20] sm:$0xf]
        %v1232 = vld [vmem:[%s934 + $0x24] sm:$0xf]
        %v1233 = vld [vmem:[%s934 + $0x28] sm:$0xf]
        %v1234 = vld [vmem:[%s934 + $0x2c] sm:$0xf]
        %v1235 = vld [vmem:[%s934 + $0x30] sm:$0xf]
        %v1236 = vld [vmem:[%s934 + $0x34] sm:$0xf]
        %v1237 = vld [vmem:[%s934 + $0x38] sm:$0xf]
        %v1238 = vld [vmem:[%s934 + $0x3c] sm:$0xf]
        %v1239 = vld [vmem:[%s938] sm:$0x1]
        %v1241 = vperm.slane %v1239, 0
        %v1259 = vunpack.c.l.b16 %v1223
        %v1260 = vunpack.c.l.b16 %v1224
        %v1261 = vunpack.c.l.b16 %v1225
        %v1262 = vunpack.c.l.b16 %v1226
        %v1263 = vunpack.c.l.b16 %v1227
        %v1264 = vunpack.c.l.b16 %v1228
        %v1265 = vunpack.c.l.b16 %v1229
        %v1266 = vunpack.c.l.b16 %v1230
        %v1267 = vunpack.c.l.b16 %v1231
        %v1268 = vunpack.c.l.b16 %v1232
        %v1269 = vunpack.c.l.b16 %v1233
        %v1270 = vunpack.c.l.b16 %v1234
        %v1271 = vunpack.c.l.b16 %v1235
        %v1272 = vunpack.c.l.b16 %v1236
        %v1273 = vunpack.c.l.b16 %v1237
        %v1274 = vunpack.c.l.b16 %v1238
        %v1275 = vpack.c.b16 %v1260, %v1259
        %v1276 = vpack.c.b16 %v1262, %v1261
        %v1277 = vpack.c.b16 %v1264, %v1263
        %v1278 = vpack.c.b16 %v1266, %v1265
        %v1279 = vpack.c.b16 %v1268, %v1267
        %v1280 = vpack.c.b16 %v1270, %v1269
        %v1281 = vpack.c.b16 %v1272, %v1271
        %v1282 = vpack.c.b16 %v1274, %v1273
        %1291 = vmatpush.bf16.msra.mxu0 %v1282
        %1292 = vmatpush.bf16.msra.mxu0 %v1281
        %1293 = vmatpush.bf16.msra.mxu0 %v1280
        %1294 = vmatpush.bf16.msra.mxu0 %v1279
        %1295 = vmatpush.bf16.msra.mxu0 %v1278
        %1296 = vmatpush.bf16.msra.mxu0 %v1277
        %1297 = vmatpush.bf16.msra.mxu0 %v1276
        %1298 = vmatpush.bf16.msra.mxu0 %v1275
        %1299 = vmatmul.bf16.gmra.mxu0 %v1077
        %v1300 = vpop.f32.mrf.mxu0
        %v1301 = vadd.f32 %v1241, %v1300
        %v1302 = vpop.f32.mrf.mxu0
        %v1303 = vadd.f32 %v1241, %v1302
        %1304 = vdwg.mxu0
        %v1305 = vpack.c.bf16 %v1137, %v1137
        %v1306 = vpack.c.bf16 %v1139, %v1139
        %v1307 = vpack.c.bf16 %v1219, %v1219
        %v1308 = vpack.c.bf16 %v1221, %v1221
        %v1309 = vpack.c.bf16 %v1301, %v1301
        %v1310 = vpack.c.bf16 %v1303, %v1303
        %v1311 = vperm.slane %v1050, 0
        %v1312 = vperm.slane %v1052, 0
        %vm1315 = vcmask 523264
        %v1317 = vsel %vm1315, %v1305, 0
        %v1320 = vsel %vm1315, %v1307, 0
        %1322 = vmatpush.bf16.xpose.msra.mxu0 0
        %1323 = vmatpush.bf16.xpose.msra.mxu0 0
        %1324 = vmatpush.bf16.xpose.msra.mxu0 0
        %1325 = vmatpush.bf16.xpose.msra.mxu0 0
        %1326 = vmatpush.bf16.xpose.msra.mxu0 0
        %1327 = vmatpush.bf16.xpose.msra.mxu0 0
        %1328 = vmatpush.bf16.xpose.msra.mxu0 0
        %1329 = vmatpush.bf16.xpose.msra.mxu0 %v1320
        %1330 = vmatmul.bf16.gmra.mxu0 %v1317
        %v1331 = vpop.f32.mrf.mxu0
        %v1332 = vadd.f32 %v1311, %v1331
        %v1333 = vpop.f32.mrf.mxu0
        %1334 = vdwg.mxu0
        %v1336 = vsel %vm1315, %v1306, 0
        %v1339 = vsel %vm1315, %v1308, 0
        %1341 = vmatpush.bf16.xpose.msra.mxu0 0
        %1342 = vmatpush.bf16.xpose.msra.mxu0 0
        %1343 = vmatpush.bf16.xpose.msra.mxu0 0
        %1344 = vmatpush.bf16.xpose.msra.mxu0 0
        %1345 = vmatpush.bf16.xpose.msra.mxu0 0
        %1346 = vmatpush.bf16.xpose.msra.mxu0 0
        %1347 = vmatpush.bf16.xpose.msra.mxu0 0
        %1348 = vmatpush.bf16.xpose.msra.mxu0 %v1339
        %1349 = vmatmul.bf16.gmra.mxu0 %v1336
        %v1350 = vpop.f32.mrf.mxu0
        %v1351 = vadd.f32 %v1312, %v1350
        %v1352 = vpop.f32.mrf.mxu0
        %1353 = vdwg.mxu0
        %vm1354 = vcmask 64512
        %v1355 = vsel %vm1354, %v1332, -inf
        %1356 = vmax.xlane.f32.xlu0 %v1355
        %v1357 = vpop.xlane.xlu0 %1356
        %v1358 = vsel %vm1354, %v1351, -inf
        %1359 = vmax.xlane.f32.xlu0 %v1358
        %v1360 = vpop.xlane.xlu0 %1359
        %v1361 = vsub.f32 %v1332, %v1357
        %v1362 = vsub.f32 %v1351, %v1360
        %v1363 = vmul.f32 %v1361, 1.442695
        %v1364 = vpow.pop %v1363
        %v1365 = vmul.f32 %v1362, 1.442695
        %v1366 = vpow.pop %v1365
        %v1367 = vsel %vm1354, %v1364, 0.0
        %1368 = vadd.xlane.f32.xlu0 %v1367
        %v1369 = vpop.xlane.xlu0 %1368
        %v1370 = vsel %vm1354, %v1366, 0.0
        %1371 = vadd.xlane.f32.xlu0 %v1370
        %v1372 = vpop.xlane.xlu0 %1371
        %v1373 = vrcp.pop %v1369
        %v1374 = vrcp.pop %v1372
        %v1375 = vmul.f32 %v1364, %v1373
        %v1376 = vmul.f32 %v1366, %v1374
        %v1377 = vpack.c.bf16 %v1375, %v1375
        %v1378 = vpack.c.bf16 %v1376, %v1376
        %v1380 = vsel %vm1354, %v1377, 0
        %vm1382 = vcmask 1043456
        %v1384 = vsel %vm1382, %v1309, 0
        %1386 = vmatpush.bf16.msra.mxu0 0
        %1387 = vmatpush.bf16.msra.mxu0 0
        %1388 = vmatpush.bf16.msra.mxu0 0
        %1389 = vmatpush.bf16.msra.mxu0 0
        %1390 = vmatpush.bf16.msra.mxu0 0
        %1391 = vmatpush.bf16.msra.mxu0 0
        %1392 = vmatpush.bf16.msra.mxu0 0
        %1393 = vmatpush.bf16.msra.mxu0 %v1384
        %1394 = vmatmul.bf16.gmra.mxu0 %v1380
        %v1395 = vpop.f32.mrf.mxu0
        %v1396 = vadd.f32 0.0, %v1395
        %v1397 = vpop.f32.mrf.mxu0
        %1398 = vdwg.mxu0
        %v1400 = vsel %vm1354, %v1378, 0
        %v1403 = vsel %vm1382, %v1310, 0
        %1405 = vmatpush.bf16.msra.mxu0 0
        %1406 = vmatpush.bf16.msra.mxu0 0
        %1407 = vmatpush.bf16.msra.mxu0 0
        %1408 = vmatpush.bf16.msra.mxu0 0
        %1409 = vmatpush.bf16.msra.mxu0 0
        %1410 = vmatpush.bf16.msra.mxu0 0
        %1411 = vmatpush.bf16.msra.mxu0 0
        %1412 = vmatpush.bf16.msra.mxu0 %v1403
        %1413 = vmatmul.bf16.gmra.mxu0 %v1400
        %v1414 = vpop.f32.mrf.mxu0
        %v1415 = vadd.f32 0.0, %v1414
        %v1416 = vpop.f32.mrf.mxu0
        %1417 = vdwg.mxu0
        %v1418 = vpack.c.bf16 %v1415, %v1396
        %v1419 = vld [vmem:[%s943] sm:$0xf]
        %v1420 = vld [vmem:[%s943 + $0x4] sm:$0xf]
        %v1421 = vld [vmem:[%s943 + $0x8] sm:$0xf]
        %v1422 = vld [vmem:[%s943 + $0xc] sm:$0xf]
        %v1423 = vld [vmem:[%s943 + $0x10] sm:$0xf]
        %v1424 = vld [vmem:[%s943 + $0x14] sm:$0xf]
        %v1425 = vld [vmem:[%s943 + $0x18] sm:$0xf]
        %v1426 = vld [vmem:[%s943 + $0x1c] sm:$0xf]
        %s1427 = scalar_lea.vmem %s916, 64
        %v1428 = vld [vmem:[%s1427] sm:$0xf]
        %v1429 = vld [vmem:[%s1427 + $0x4] sm:$0xf]
        %v1430 = vld [vmem:[%s1427 + $0x8] sm:$0xf]
        %v1431 = vld [vmem:[%s1427 + $0xc] sm:$0xf]
        %v1432 = vld [vmem:[%s1427 + $0x10] sm:$0xf]
        %v1433 = vld [vmem:[%s1427 + $0x14] sm:$0xf]
        %v1434 = vld [vmem:[%s1427 + $0x18] sm:$0xf]
        %v1435 = vld [vmem:[%s1427 + $0x1c] sm:$0xf]
        %v1436 = vld [vmem:[%s1427 + $0x20] sm:$0xf]
        %v1437 = vld [vmem:[%s1427 + $0x24] sm:$0xf]
        %v1438 = vld [vmem:[%s1427 + $0x28] sm:$0xf]
        %v1439 = vld [vmem:[%s1427 + $0x2c] sm:$0xf]
        %v1440 = vld [vmem:[%s1427 + $0x30] sm:$0xf]
        %v1441 = vld [vmem:[%s1427 + $0x34] sm:$0xf]
        %v1442 = vld [vmem:[%s1427 + $0x38] sm:$0xf]
        %v1443 = vld [vmem:[%s1427 + $0x3c] sm:$0xf]
        %s1444 = scalar_lea.vmem %s920, 1
        %v1445 = vld [vmem:[%s1444] sm:$0x1]
        %v1447 = vperm.slane %v1445, 0
        %v1465 = vunpack.c.l.b16 %v1428
        %v1466 = vunpack.c.l.b16 %v1429
        %v1467 = vunpack.c.l.b16 %v1430
        %v1468 = vunpack.c.l.b16 %v1431
        %v1469 = vunpack.c.l.b16 %v1432
        %v1470 = vunpack.c.l.b16 %v1433
        %v1471 = vunpack.c.l.b16 %v1434
        %v1472 = vunpack.c.l.b16 %v1435
        %v1473 = vunpack.c.l.b16 %v1436
        %v1474 = vunpack.c.l.b16 %v1437
        %v1475 = vunpack.c.l.b16 %v1438
        %v1476 = vunpack.c.l.b16 %v1439
        %v1477 = vunpack.c.l.b16 %v1440
        %v1478 = vunpack.c.l.b16 %v1441
        %v1479 = vunpack.c.l.b16 %v1442
        %v1480 = vunpack.c.l.b16 %v1443
        %v1481 = vpack.c.b16 %v1466, %v1465
        %v1482 = vpack.c.b16 %v1468, %v1467
        %v1483 = vpack.c.b16 %v1470, %v1469
        %v1484 = vpack.c.b16 %v1472, %v1471
        %v1485 = vpack.c.b16 %v1474, %v1473
        %v1486 = vpack.c.b16 %v1476, %v1475
        %v1487 = vpack.c.b16 %v1478, %v1477
        %v1488 = vpack.c.b16 %v1480, %v1479
        %1497 = vmatpush.bf16.msra.mxu0 %v1488
        %1498 = vmatpush.bf16.msra.mxu0 %v1487
        %1499 = vmatpush.bf16.msra.mxu0 %v1486
        %1500 = vmatpush.bf16.msra.mxu0 %v1485
        %1501 = vmatpush.bf16.msra.mxu0 %v1484
        %1502 = vmatpush.bf16.msra.mxu0 %v1483
        %1503 = vmatpush.bf16.msra.mxu0 %v1482
        %1504 = vmatpush.bf16.msra.mxu0 %v1481
        %1505 = vmatmul.bf16.gmra.mxu0 %v1077
        %v1506 = vpop.f32.mrf.mxu0
        %v1507 = vadd.f32 %v1447, %v1506
        %v1508 = vpop.f32.mrf.mxu0
        %v1509 = vadd.f32 %v1447, %v1508
        %1510 = vdwg.mxu0
        %s1511 = scalar_lea.vmem %s925, 64
        %v1512 = vld [vmem:[%s1511] sm:$0xf]
        %v1513 = vld [vmem:[%s1511 + $0x4] sm:$0xf]
        %v1514 = vld [vmem:[%s1511 + $0x8] sm:$0xf]
        %v1515 = vld [vmem:[%s1511 + $0xc] sm:$0xf]
        %v1516 = vld [vmem:[%s1511 + $0x10] sm:$0xf]
        %v1517 = vld [vmem:[%s1511 + $0x14] sm:$0xf]
        %v1518 = vld [vmem:[%s1511 + $0x18] sm:$0xf]
        %v1519 = vld [vmem:[%s1511 + $0x1c] sm:$0xf]
        %v1520 = vld [vmem:[%s1511 + $0x20] sm:$0xf]
        %v1521 = vld [vmem:[%s1511 + $0x24] sm:$0xf]
        %v1522 = vld [vmem:[%s1511 + $0x28] sm:$0xf]
        %v1523 = vld [vmem:[%s1511 + $0x2c] sm:$0xf]
        %v1524 = vld [vmem:[%s1511 + $0x30] sm:$0xf]
        %v1525 = vld [vmem:[%s1511 + $0x34] sm:$0xf]
        %v1526 = vld [vmem:[%s1511 + $0x38] sm:$0xf]
        %v1527 = vld [vmem:[%s1511 + $0x3c] sm:$0xf]
        %s1528 = scalar_lea.vmem %s929, 1
        %v1529 = vld [vmem:[%s1528] sm:$0x1]
        %v1531 = vperm.slane %v1529, 0
        %v1549 = vunpack.c.l.b16 %v1512
        %v1550 = vunpack.c.l.b16 %v1513
        %v1551 = vunpack.c.l.b16 %v1514
        %v1552 = vunpack.c.l.b16 %v1515
        %v1553 = vunpack.c.l.b16 %v1516
        %v1554 = vunpack.c.l.b16 %v1517
        %v1555 = vunpack.c.l.b16 %v1518
        %v1556 = vunpack.c.l.b16 %v1519
        %v1557 = vunpack.c.l.b16 %v1520
        %v1558 = vunpack.c.l.b16 %v1521
        %v1559 = vunpack.c.l.b16 %v1522
        %v1560 = vunpack.c.l.b16 %v1523
        %v1561 = vunpack.c.l.b16 %v1524
        %v1562 = vunpack.c.l.b16 %v1525
        %v1563 = vunpack.c.l.b16 %v1526
        %v1564 = vunpack.c.l.b16 %v1527
        %v1565 = vpack.c.b16 %v1550, %v1549
        %v1566 = vpack.c.b16 %v1552, %v1551
        %v1567 = vpack.c.b16 %v1554, %v1553
        %v1568 = vpack.c.b16 %v1556, %v1555
        %v1569 = vpack.c.b16 %v1558, %v1557
        %v1570 = vpack.c.b16 %v1560, %v1559
        %v1571 = vpack.c.b16 %v1562, %v1561
        %v1572 = vpack.c.b16 %v1564, %v1563
        %1581 = vmatpush.bf16.msra.mxu0 %v1572
        %1582 = vmatpush.bf16.msra.mxu0 %v1571
        %1583 = vmatpush.bf16.msra.mxu0 %v1570
        %1584 = vmatpush.bf16.msra.mxu0 %v1569
        %1585 = vmatpush.bf16.msra.mxu0 %v1568
        %1586 = vmatpush.bf16.msra.mxu0 %v1567
        %1587 = vmatpush.bf16.msra.mxu0 %v1566
        %1588 = vmatpush.bf16.msra.mxu0 %v1565
        %1589 = vmatmul.bf16.gmra.mxu0 %v1077
        %v1590 = vpop.f32.mrf.mxu0
        %v1591 = vadd.f32 %v1531, %v1590
        %v1592 = vpop.f32.mrf.mxu0
        %v1593 = vadd.f32 %v1531, %v1592
        %1594 = vdwg.mxu0
        %s1595 = scalar_lea.vmem %s934, 64
        %v1596 = vld [vmem:[%s1595] sm:$0xf]
        %v1597 = vld [vmem:[%s1595 + $0x4] sm:$0xf]
        %v1598 = vld [vmem:[%s1595 + $0x8] sm:$0xf]
        %v1599 = vld [vmem:[%s1595 + $0xc] sm:$0xf]
        %v1600 = vld [vmem:[%s1595 + $0x10] sm:$0xf]
        %v1601 = vld [vmem:[%s1595 + $0x14] sm:$0xf]
        %v1602 = vld [vmem:[%s1595 + $0x18] sm:$0xf]
        %v1603 = vld [vmem:[%s1595 + $0x1c] sm:$0xf]
        %v1604 = vld [vmem:[%s1595 + $0x20] sm:$0xf]
        %v1605 = vld [vmem:[%s1595 + $0x24] sm:$0xf]
        %v1606 = vld [vmem:[%s1595 + $0x28] sm:$0xf]
        %v1607 = vld [vmem:[%s1595 + $0x2c] sm:$0xf]
        %v1608 = vld [vmem:[%s1595 + $0x30] sm:$0xf]
        %v1609 = vld [vmem:[%s1595 + $0x34] sm:$0xf]
        %v1610 = vld [vmem:[%s1595 + $0x38] sm:$0xf]
        %v1611 = vld [vmem:[%s1595 + $0x3c] sm:$0xf]
        %s1612 = scalar_lea.vmem %s938, 1
        %v1613 = vld [vmem:[%s1612] sm:$0x1]
        %v1615 = vperm.slane %v1613, 0
        %v1633 = vunpack.c.l.b16 %v1596
        %v1634 = vunpack.c.l.b16 %v1597
        %v1635 = vunpack.c.l.b16 %v1598
        %v1636 = vunpack.c.l.b16 %v1599
        %v1637 = vunpack.c.l.b16 %v1600
        %v1638 = vunpack.c.l.b16 %v1601
        %v1639 = vunpack.c.l.b16 %v1602
        %v1640 = vunpack.c.l.b16 %v1603
        %v1641 = vunpack.c.l.b16 %v1604
        %v1642 = vunpack.c.l.b16 %v1605
        %v1643 = vunpack.c.l.b16 %v1606
        %v1644 = vunpack.c.l.b16 %v1607
        %v1645 = vunpack.c.l.b16 %v1608
        %v1646 = vunpack.c.l.b16 %v1609
        %v1647 = vunpack.c.l.b16 %v1610
        %v1648 = vunpack.c.l.b16 %v1611
        %v1649 = vpack.c.b16 %v1634, %v1633
        %v1650 = vpack.c.b16 %v1636, %v1635
        %v1651 = vpack.c.b16 %v1638, %v1637
        %v1652 = vpack.c.b16 %v1640, %v1639
        %v1653 = vpack.c.b16 %v1642, %v1641
        %v1654 = vpack.c.b16 %v1644, %v1643
        %v1655 = vpack.c.b16 %v1646, %v1645
        %v1656 = vpack.c.b16 %v1648, %v1647
        %1665 = vmatpush.bf16.msra.mxu0 %v1656
        %1666 = vmatpush.bf16.msra.mxu0 %v1655
        %1667 = vmatpush.bf16.msra.mxu0 %v1654
        %1668 = vmatpush.bf16.msra.mxu0 %v1653
        %1669 = vmatpush.bf16.msra.mxu0 %v1652
        %1670 = vmatpush.bf16.msra.mxu0 %v1651
        %1671 = vmatpush.bf16.msra.mxu0 %v1650
        %1672 = vmatpush.bf16.msra.mxu0 %v1649
        %1673 = vmatmul.bf16.gmra.mxu0 %v1077
        %v1674 = vpop.f32.mrf.mxu0
        %v1675 = vadd.f32 %v1615, %v1674
        %v1676 = vpop.f32.mrf.mxu0
        %v1677 = vadd.f32 %v1615, %v1676
        %1678 = vdwg.mxu0
        %v1679 = vpack.c.bf16 %v1507, %v1507
        %v1680 = vpack.c.bf16 %v1509, %v1509
        %v1681 = vpack.c.bf16 %v1591, %v1591
        %v1682 = vpack.c.bf16 %v1593, %v1593
        %v1683 = vpack.c.bf16 %v1675, %v1675
        %v1684 = vpack.c.bf16 %v1677, %v1677
        %v1686 = vsel %vm1315, %v1679, 0
        %v1689 = vsel %vm1315, %v1681, 0
        %1691 = vmatpush.bf16.xpose.msra.mxu0 0
        %1692 = vmatpush.bf16.xpose.msra.mxu0 0
        %1693 = vmatpush.bf16.xpose.msra.mxu0 0
        %1694 = vmatpush.bf16.xpose.msra.mxu0 0
        %1695 = vmatpush.bf16.xpose.msra.mxu0 0
        %1696 = vmatpush.bf16.xpose.msra.mxu0 0
        %1697 = vmatpush.bf16.xpose.msra.mxu0 0
        %1698 = vmatpush.bf16.xpose.msra.mxu0 %v1689
        %1699 = vmatmul.bf16.gmra.mxu0 %v1686
        %v1700 = vpop.f32.mrf.mxu0
        %v1701 = vadd.f32 %v1311, %v1700
        %v1702 = vpop.f32.mrf.mxu0
        %1703 = vdwg.mxu0
        %v1705 = vsel %vm1315, %v1680, 0
        %v1708 = vsel %vm1315, %v1682, 0
        %1710 = vmatpush.bf16.xpose.msra.mxu0 0
        %1711 = vmatpush.bf16.xpose.msra.mxu0 0
        %1712 = vmatpush.bf16.xpose.msra.mxu0 0
        %1713 = vmatpush.bf16.xpose.msra.mxu0 0
        %1714 = vmatpush.bf16.xpose.msra.mxu0 0
        %1715 = vmatpush.bf16.xpose.msra.mxu0 0
        %1716 = vmatpush.bf16.xpose.msra.mxu0 0
        %1717 = vmatpush.bf16.xpose.msra.mxu0 %v1708
        %1718 = vmatmul.bf16.gmra.mxu0 %v1705
        %v1719 = vpop.f32.mrf.mxu0
        %v1720 = vadd.f32 %v1312, %v1719
        %v1721 = vpop.f32.mrf.mxu0
        %1722 = vdwg.mxu0
        %v1723 = vsel %vm1354, %v1701, -inf
        %1724 = vmax.xlane.f32.xlu0 %v1723
        %v1725 = vpop.xlane.xlu0 %1724
        %v1726 = vsel %vm1354, %v1720, -inf
        %1727 = vmax.xlane.f32.xlu0 %v1726
        %v1728 = vpop.xlane.xlu0 %1727
        %v1729 = vsub.f32 %v1701, %v1725
        %v1730 = vsub.f32 %v1720, %v1728
        %v1731 = vmul.f32 %v1729, 1.442695
        %v1732 = vpow.pop %v1731
        %v1733 = vmul.f32 %v1730, 1.442695
        %v1734 = vpow.pop %v1733
        %v1735 = vsel %vm1354, %v1732, 0.0
        %1736 = vadd.xlane.f32.xlu0 %v1735
        %v1737 = vpop.xlane.xlu0 %1736
        %v1738 = vsel %vm1354, %v1734, 0.0
        %1739 = vadd.xlane.f32.xlu0 %v1738
        %v1740 = vpop.xlane.xlu0 %1739
        %v1741 = vrcp.pop %v1737
        %v1742 = vrcp.pop %v1740
        %v1743 = vmul.f32 %v1732, %v1741
        %v1744 = vmul.f32 %v1734, %v1742
        %v1745 = vpack.c.bf16 %v1743, %v1743
        %v1746 = vpack.c.bf16 %v1744, %v1744
        %v1748 = vsel %vm1354, %v1745, 0
        %v1751 = vsel %vm1382, %v1683, 0
        %1753 = vmatpush.bf16.msra.mxu0 0
        %1754 = vmatpush.bf16.msra.mxu0 0
        %1755 = vmatpush.bf16.msra.mxu0 0
        %1756 = vmatpush.bf16.msra.mxu0 0
        %1757 = vmatpush.bf16.msra.mxu0 0
        %1758 = vmatpush.bf16.msra.mxu0 0
        %1759 = vmatpush.bf16.msra.mxu0 0
        %1760 = vmatpush.bf16.msra.mxu0 %v1751
        %1761 = vmatmul.bf16.gmra.mxu0 %v1748
        %v1762 = vpop.f32.mrf.mxu0
        %v1763 = vadd.f32 0.0, %v1762
        %v1764 = vpop.f32.mrf.mxu0
        %1765 = vdwg.mxu0
        %v1767 = vsel %vm1354, %v1746, 0
        %v1770 = vsel %vm1382, %v1684, 0
        %1772 = vmatpush.bf16.msra.mxu0 0
        %1773 = vmatpush.bf16.msra.mxu0 0
        %1774 = vmatpush.bf16.msra.mxu0 0
        %1775 = vmatpush.bf16.msra.mxu0 0
        %1776 = vmatpush.bf16.msra.mxu0 0
        %1777 = vmatpush.bf16.msra.mxu0 0
        %1778 = vmatpush.bf16.msra.mxu0 0
        %1779 = vmatpush.bf16.msra.mxu0 %v1770
        %1780 = vmatmul.bf16.gmra.mxu0 %v1767
        %v1781 = vpop.f32.mrf.mxu0
        %v1782 = vadd.f32 0.0, %v1781
        %v1783 = vpop.f32.mrf.mxu0
        %1784 = vdwg.mxu0
        %v1785 = vpack.c.bf16 %v1782, %v1763
        %s1786 = scalar_lea.vmem %s943, 32
        %v1787 = vld [vmem:[%s1786] sm:$0xf]
        %v1788 = vld [vmem:[%s1786 + $0x4] sm:$0xf]
        %v1789 = vld [vmem:[%s1786 + $0x8] sm:$0xf]
        %v1790 = vld [vmem:[%s1786 + $0xc] sm:$0xf]
        %v1791 = vld [vmem:[%s1786 + $0x10] sm:$0xf]
        %v1792 = vld [vmem:[%s1786 + $0x14] sm:$0xf]
        %v1793 = vld [vmem:[%s1786 + $0x18] sm:$0xf]
        %v1794 = vld [vmem:[%s1786 + $0x1c] sm:$0xf]
        %v1803 = vunpack.c.l.b16 %v1787
        %v1804 = vunpack.c.l.b16 %v1788
        %v1805 = vunpack.c.l.b16 %v1789
        %v1806 = vunpack.c.l.b16 %v1790
        %v1807 = vunpack.c.l.b16 %v1791
        %v1808 = vunpack.c.l.b16 %v1792
        %v1809 = vunpack.c.l.b16 %v1793
        %v1810 = vunpack.c.l.b16 %v1794
        %v1811 = vpack.c.b16 %v1804, %v1803
        %v1812 = vpack.c.b16 %v1806, %v1805
        %v1813 = vpack.c.b16 %v1808, %v1807
        %v1814 = vpack.c.b16 %v1810, %v1809
        %v1820 = vsel %vm1315, %v1785, 0
        %1822 = vmatpush.bf16.msra.mxu0 0
        %1823 = vmatpush.bf16.msra.mxu0 0
        %1824 = vmatpush.bf16.msra.mxu0 0
        %1825 = vmatpush.bf16.msra.mxu0 0
        %1826 = vmatpush.bf16.msra.mxu0 %v1814
        %1827 = vmatpush.bf16.msra.mxu0 %v1813
        %1828 = vmatpush.bf16.msra.mxu0 %v1812
        %1829 = vmatpush.bf16.msra.mxu0 %v1811
        %1830 = vmatmul.bf16.gmra.mxu0 %v1820
        %v1831 = vpop.f32.mrf.mxu0
        %v1832 = vadd.f32 0.0, %v1831
        %v1833 = vpop.f32.mrf.mxu0
        %v1834 = vadd.f32 0.0, %v1833
        %1835 = vdwg.mxu0
        %v1844 = vunpack.c.l.b16 %v1419
        %v1845 = vunpack.c.l.b16 %v1420
        %v1846 = vunpack.c.l.b16 %v1421
        %v1847 = vunpack.c.l.b16 %v1422
        %v1848 = vunpack.c.l.b16 %v1423
        %v1849 = vunpack.c.l.b16 %v1424
        %v1850 = vunpack.c.l.b16 %v1425
        %v1851 = vunpack.c.l.b16 %v1426
        %v1852 = vpack.c.b16 %v1845, %v1844
        %v1853 = vpack.c.b16 %v1847, %v1846
        %v1854 = vpack.c.b16 %v1849, %v1848
        %v1855 = vpack.c.b16 %v1851, %v1850
        %v1861 = vsel %vm1315, %v1418, 0
        %1863 = vmatpush.bf16.msra.mxu0 0
        %1864 = vmatpush.bf16.msra.mxu0 0
        %1865 = vmatpush.bf16.msra.mxu0 0
        %1866 = vmatpush.bf16.msra.mxu0 0
        %1867 = vmatpush.bf16.msra.mxu0 %v1855
        %1868 = vmatpush.bf16.msra.mxu0 %v1854
        %1869 = vmatpush.bf16.msra.mxu0 %v1853
        %1870 = vmatpush.bf16.msra.mxu0 %v1852
        %1871 = vmatmul.bf16.gmra.mxu0 %v1861
        %v1872 = vpop.f32.mrf.mxu0
        %v1873 = vadd.f32 %v1832, %v1872
        %v1874 = vpop.f32.mrf.mxu0
        %v1875 = vadd.f32 %v1834, %v1874
        %1876 = vdwg.mxu0
        %v1877 = vld [vmem:[%s946] sm:$0x1]
        %v1879 = vperm.slane %v1877, 0
        %v1881 = vadd.f32 %v1873, %v1879
        %v1882 = vadd.f32 %v1875, %v1879
        %v1883 = vadd.f32 %v1881, %v1048
        %v1884 = vadd.f32 %v1882, %v1049
        %1885 = vadd.xlane.f32.xlu0 %v1883
        %v1886 = vpop.xlane.xlu0 %1885
        %1887 = vadd.xlane.f32.xlu0 %v1884
        %v1888 = vpop.xlane.xlu0 %1887
        %v1889 = vrcp.pop 128.0
        %v1890 = vmul.f32 128.0, %v1889
        %v1891 = vsub.f32 1.0, %v1890
        %v1892 = vmul.f32 %v1889, %v1891
        %v1893 = vadd.f32 %v1889, %v1892
        %vm1894 = vweird.f32 %v1889
        %v1895 = vsel %vm1894, %v1889, %v1893
        %v1896 = vmul.f32 %v1886, %v1895
        %v1897 = vmul.f32 %v1888, %v1895
        %v1898 = vsub.f32 %v1883, %v1896
        %v1899 = vsub.f32 %v1884, %v1897
        %v1900 = vmul.f32 %v1898, %v1898
        %v1901 = vmul.f32 %v1899, %v1899
        %1902 = vadd.xlane.f32.xlu0 %v1900
        %v1903 = vpop.xlane.xlu0 %1902
        %1904 = vadd.xlane.f32.xlu0 %v1901
        %v1905 = vpop.xlane.xlu0 %1904
        %v1906 = vmul.f32 %v1903, %v1895
        %v1907 = vmul.f32 %v1905, %v1895
        %v1908 = vadd.f32 %v1906, 1e-12
        %v1909 = vadd.f32 %v1907, 1e-12
        %v1910 = vrsqrt.pop %v1908
        %v1911 = vmul.f32 %v1910, %v1908
        %v1912 = vmul.f32 %v1911, %v1910
        %v1913 = vmul.f32 0.5, %v1912
        %v1914 = vsub.f32 1.5, %v1913
        %v1915 = vmul.f32 %v1910, %v1914
        %vm1916 = vweird.f32 %v1908
        %vm1917 = vweird.f32 %v1910
        %vm1918 = vmor %vm1916, %vm1917
        %v1919 = vsel %vm1918, %v1910, %v1915
        %v1920 = vrsqrt.pop %v1909
        %v1921 = vmul.f32 %v1920, %v1909
        %v1922 = vmul.f32 %v1921, %v1920
        %v1923 = vmul.f32 0.5, %v1922
        %v1924 = vsub.f32 1.5, %v1923
        %v1925 = vmul.f32 %v1920, %v1924
        %vm1926 = vweird.f32 %v1909
        %vm1927 = vweird.f32 %v1920
        %vm1928 = vmor %vm1926, %vm1927
        %v1929 = vsel %vm1928, %v1920, %v1925
        %v1930 = vmul.f32 %v1898, %v1919
        %v1931 = vmul.f32 %v1899, %v1929
        %v1932 = vld [vmem:[%s949] sm:$0x1]
        %v1934 = vperm.slane %v1932, 0
        %v1936 = vmul.f32 %v1930, %v1934
        %v1937 = vmul.f32 %v1931, %v1934
        %v1938 = vld [vmem:[%s952] sm:$0x1]
        %v1940 = vperm.slane %v1938, 0
        %v1942 = vadd.f32 %v1936, %v1940
        %v1943 = vadd.f32 %v1937, %v1940
        %v1944 = vpack.c.bf16 %v1943, %v1942
        %v1945 = vld [vmem:[%s957] sm:$0xff]
        %v1946 = vld [vmem:[%s957 + $0x8] sm:$0xff]
        %v1947 = vld [vmem:[%s957 + $0x10] sm:$0xff]
        %v1948 = vld [vmem:[%s957 + $0x18] sm:$0xff]
        %v1949 = vld [vmem:[%s957 + $0x20] sm:$0xff]
        %v1950 = vld [vmem:[%s957 + $0x28] sm:$0xff]
        %v1951 = vld [vmem:[%s957 + $0x30] sm:$0xff]
        %v1952 = vld [vmem:[%s957 + $0x38] sm:$0xff]
        %v1953 = vld [vmem:[%s957 + $0x40] sm:$0xff]
        %v1954 = vld [vmem:[%s957 + $0x48] sm:$0xff]
        %v1955 = vld [vmem:[%s957 + $0x50] sm:$0xff]
        %v1956 = vld [vmem:[%s957 + $0x58] sm:$0xff]
        %v1957 = vld [vmem:[%s957 + $0x60] sm:$0xff]
        %v1958 = vld [vmem:[%s957 + $0x68] sm:$0xff]
        %v1959 = vld [vmem:[%s957 + $0x70] sm:$0xff]
        %v1960 = vld [vmem:[%s957 + $0x78] sm:$0xff]
        %v1961 = vld [vmem:[%s961] sm:$0x3]
        %v1963 = vperm.slane %v1961, 0
        %v1964 = vperm.slane %v1961, 1
        %v1983 = vunpack.c.l.b16 %v1945
        %v1984 = vunpack.c.h.b16 %v1945
        %v1985 = vunpack.c.l.b16 %v1946
        %v1986 = vunpack.c.h.b16 %v1946
        %v1987 = vunpack.c.l.b16 %v1947
        %v1988 = vunpack.c.h.b16 %v1947
        %v1989 = vunpack.c.l.b16 %v1948
        %v1990 = vunpack.c.h.b16 %v1948
        %v1991 = vunpack.c.l.b16 %v1949
        %v1992 = vunpack.c.h.b16 %v1949
        %v1993 = vunpack.c.l.b16 %v1950
        %v1994 = vunpack.c.h.b16 %v1950
        %v1995 = vunpack.c.l.b16 %v1951
        %v1996 = vunpack.c.h.b16 %v1951
        %v1997 = vunpack.c.l.b16 %v1952
        %v1998 = vunpack.c.h.b16 %v1952
        %v1999 = vunpack.c.l.b16 %v1953
        %v2000 = vunpack.c.h.b16 %v1953
        %v2001 = vunpack.c.l.b16 %v1954
        %v2002 = vunpack.c.h.b16 %v1954
        %v2003 = vunpack.c.l.b16 %v1955
        %v2004 = vunpack.c.h.b16 %v1955
        %v2005 = vunpack.c.l.b16 %v1956
        %v2006 = vunpack.c.h.b16 %v1956
        %v2007 = vunpack.c.l.b16 %v1957
        %v2008 = vunpack.c.h.b16 %v1957
        %v2009 = vunpack.c.l.b16 %v1958
        %v2010 = vunpack.c.h.b16 %v1958
        %v2011 = vunpack.c.l.b16 %v1959
        %v2012 = vunpack.c.h.b16 %v1959
        %v2013 = vunpack.c.l.b16 %v1960
        %v2014 = vunpack.c.h.b16 %v1960
        %v2015 = vpack.c.b16 %v1985, %v1983
        %v2016 = vpack.c.b16 %v1986, %v1984
        %v2017 = vpack.c.b16 %v1989, %v1987
        %v2018 = vpack.c.b16 %v1990, %v1988
        %v2019 = vpack.c.b16 %v1993, %v1991
        %v2020 = vpack.c.b16 %v1994, %v1992
        %v2021 = vpack.c.b16 %v1997, %v1995
        %v2022 = vpack.c.b16 %v1998, %v1996
        %v2023 = vpack.c.b16 %v2001, %v1999
        %v2024 = vpack.c.b16 %v2002, %v2000
        %v2025 = vpack.c.b16 %v2005, %v2003
        %v2026 = vpack.c.b16 %v2006, %v2004
        %v2027 = vpack.c.b16 %v2009, %v2007
        %v2028 = vpack.c.b16 %v2010, %v2008
        %v2029 = vpack.c.b16 %v2013, %v2011
        %v2030 = vpack.c.b16 %v2014, %v2012
        %2047 = vmatpush.bf16.msra.mxu0 %v2029
        %2048 = vmatpush.bf16.msra.mxu0 %v2027
        %2049 = vmatpush.bf16.msra.mxu0 %v2025
        %2050 = vmatpush.bf16.msra.mxu0 %v2023
        %2051 = vmatpush.bf16.msra.mxu0 %v2021
        %2052 = vmatpush.bf16.msra.mxu0 %v2019
        %2053 = vmatpush.bf16.msra.mxu0 %v2017
        %2054 = vmatpush.bf16.msra.mxu0 %v2015
        %2055 = vmatmul.bf16.gmra.mxu0 %v1944
        %v2056 = vpop.f32.mrf.mxu0
        %v2057 = vadd.f32 %v1963, %v2056
        %v2058 = vpop.f32.mrf.mxu0
        %v2059 = vadd.f32 %v1963, %v2058
        %2060 = vdwg.mxu0
        %2061 = vmatpush.bf16.msra.mxu0 %v2030
        %2062 = vmatpush.bf16.msra.mxu0 %v2028
        %2063 = vmatpush.bf16.msra.mxu0 %v2026
        %2064 = vmatpush.bf16.msra.mxu0 %v2024
        %2065 = vmatpush.bf16.msra.mxu0 %v2022
        %2066 = vmatpush.bf16.msra.mxu0 %v2020
        %2067 = vmatpush.bf16.msra.mxu0 %v2018
        %2068 = vmatpush.bf16.msra.mxu0 %v2016
        %2069 = vmatmul.bf16.gmra.mxu0 %v1944
        %v2070 = vpop.f32.mrf.mxu0
        %v2071 = vadd.f32 %v1964, %v2070
        %v2072 = vpop.f32.mrf.mxu0
        %v2073 = vadd.f32 %v1964, %v2072
        %2074 = vdwg.mxu0
        %v2075 = vmul.f32 %v2057, %v2057
        %v2076 = vmul.f32 %v2071, %v2071
        %v2077 = vmul.f32 %v2059, %v2059
        %v2078 = vmul.f32 %v2073, %v2073
        %v2079 = vmul.f32 %v2057, %v2075
        %v2080 = vmul.f32 %v2071, %v2076
        %v2081 = vmul.f32 %v2059, %v2077
        %v2082 = vmul.f32 %v2073, %v2078
        %v2083 = vmul.f32 %v2079, 0.044715
        %v2084 = vmul.f32 %v2080, 0.044715
        %v2085 = vmul.f32 %v2081, 0.044715
        %v2086 = vmul.f32 %v2082, 0.044715
        %v2087 = vadd.f32 %v2057, %v2083
        %v2088 = vadd.f32 %v2071, %v2084
        %v2089 = vadd.f32 %v2059, %v2085
        %v2090 = vadd.f32 %v2073, %v2086
        %v2091 = vmul.f32 %v2087, 0.7978846
        %v2092 = vmul.f32 %v2088, 0.7978846
        %v2093 = vmul.f32 %v2089, 0.7978846
        %v2094 = vmul.f32 %v2090, 0.7978846
        %v2095 = vtanh.pop %v2091
        %v2096 = vtanh.pop %v2092
        %v2097 = vtanh.pop %v2093
        %v2098 = vtanh.pop %v2094
        %v2099 = vadd.f32 %v2095, 1.0
        %v2100 = vadd.f32 %v2096, 1.0
        %v2101 = vadd.f32 %v2097, 1.0
        %v2102 = vadd.f32 %v2098, 1.0
        %v2103 = vmul.f32 %v2099, 0.5
        %v2104 = vmul.f32 %v2100, 0.5
        %v2105 = vmul.f32 %v2101, 0.5
        %v2106 = vmul.f32 %v2102, 0.5
        %v2107 = vmul.f32 %v2057, %v2103
        %v2108 = vmul.f32 %v2071, %v2104
        %v2109 = vmul.f32 %v2059, %v2105
        %v2110 = vmul.f32 %v2073, %v2106
        %v2111 = vpack.c.bf16 %v2109, %v2107
        %v2112 = vpack.c.bf16 %v2110, %v2108
        %v2113 = vld [vmem:[%s966] sm:$0xf]
        %v2114 = vld [vmem:[%s966 + $0x4] sm:$0xf]
        %v2115 = vld [vmem:[%s966 + $0x8] sm:$0xf]
        %v2116 = vld [vmem:[%s966 + $0xc] sm:$0xf]
        %v2117 = vld [vmem:[%s966 + $0x10] sm:$0xf]
        %v2118 = vld [vmem:[%s966 + $0x14] sm:$0xf]
        %v2119 = vld [vmem:[%s966 + $0x18] sm:$0xf]
        %v2120 = vld [vmem:[%s966 + $0x1c] sm:$0xf]
        %v2121 = vld [vmem:[%s966 + $0x20] sm:$0xf]
        %v2122 = vld [vmem:[%s966 + $0x24] sm:$0xf]
        %v2123 = vld [vmem:[%s966 + $0x28] sm:$0xf]
        %v2124 = vld [vmem:[%s966 + $0x2c] sm:$0xf]
        %v2125 = vld [vmem:[%s966 + $0x30] sm:$0xf]
        %v2126 = vld [vmem:[%s966 + $0x34] sm:$0xf]
        %v2127 = vld [vmem:[%s966 + $0x38] sm:$0xf]
        %v2128 = vld [vmem:[%s966 + $0x3c] sm:$0xf]
        %v2129 = vld [vmem:[%s966 + $0x40] sm:$0xf]
        %v2130 = vld [vmem:[%s966 + $0x44] sm:$0xf]
        %v2131 = vld [vmem:[%s966 + $0x48] sm:$0xf]
        %v2132 = vld [vmem:[%s966 + $0x4c] sm:$0xf]
        %v2133 = vld [vmem:[%s966 + $0x50] sm:$0xf]
        %v2134 = vld [vmem:[%s966 + $0x54] sm:$0xf]
        %v2135 = vld [vmem:[%s966 + $0x58] sm:$0xf]
        %v2136 = vld [vmem:[%s966 + $0x5c] sm:$0xf]
        %v2137 = vld [vmem:[%s966 + $0x60] sm:$0xf]
        %v2138 = vld [vmem:[%s966 + $0x64] sm:$0xf]
        %v2139 = vld [vmem:[%s966 + $0x68] sm:$0xf]
        %v2140 = vld [vmem:[%s966 + $0x6c] sm:$0xf]
        %v2141 = vld [vmem:[%s966 + $0x70] sm:$0xf]
        %v2142 = vld [vmem:[%s966 + $0x74] sm:$0xf]
        %v2143 = vld [vmem:[%s966 + $0x78] sm:$0xf]
        %v2144 = vld [vmem:[%s966 + $0x7c] sm:$0xf]
        %v2145 = vld [vmem:[%s969] sm:$0x1]
        %v2147 = vperm.slane %v2145, 0
        %v2181 = vunpack.c.l.b16 %v2113
        %v2182 = vunpack.c.l.b16 %v2114
        %v2183 = vunpack.c.l.b16 %v2115
        %v2184 = vunpack.c.l.b16 %v2116
        %v2185 = vunpack.c.l.b16 %v2117
        %v2186 = vunpack.c.l.b16 %v2118
        %v2187 = vunpack.c.l.b16 %v2119
        %v2188 = vunpack.c.l.b16 %v2120
        %v2189 = vunpack.c.l.b16 %v2121
        %v2190 = vunpack.c.l.b16 %v2122
        %v2191 = vunpack.c.l.b16 %v2123
        %v2192 = vunpack.c.l.b16 %v2124
        %v2193 = vunpack.c.l.b16 %v2125
        %v2194 = vunpack.c.l.b16 %v2126
        %v2195 = vunpack.c.l.b16 %v2127
        %v2196 = vunpack.c.l.b16 %v2128
        %v2197 = vunpack.c.l.b16 %v2129
        %v2198 = vunpack.c.l.b16 %v2130
        %v2199 = vunpack.c.l.b16 %v2131
        %v2200 = vunpack.c.l.b16 %v2132
        %v2201 = vunpack.c.l.b16 %v2133
        %v2202 = vunpack.c.l.b16 %v2134
        %v2203 = vunpack.c.l.b16 %v2135
        %v2204 = vunpack.c.l.b16 %v2136
        %v2205 = vunpack.c.l.b16 %v2137
        %v2206 = vunpack.c.l.b16 %v2138
        %v2207 = vunpack.c.l.b16 %v2139
        %v2208 = vunpack.c.l.b16 %v2140
        %v2209 = vunpack.c.l.b16 %v2141
        %v2210 = vunpack.c.l.b16 %v2142
        %v2211 = vunpack.c.l.b16 %v2143
        %v2212 = vunpack.c.l.b16 %v2144
        %v2213 = vpack.c.b16 %v2182, %v2181
        %v2214 = vpack.c.b16 %v2184, %v2183
        %v2215 = vpack.c.b16 %v2186, %v2185
        %v2216 = vpack.c.b16 %v2188, %v2187
        %v2217 = vpack.c.b16 %v2190, %v2189
        %v2218 = vpack.c.b16 %v2192, %v2191
        %v2219 = vpack.c.b16 %v2194, %v2193
        %v2220 = vpack.c.b16 %v2196, %v2195
        %v2221 = vpack.c.b16 %v2198, %v2197
        %v2222 = vpack.c.b16 %v2200, %v2199
        %v2223 = vpack.c.b16 %v2202, %v2201
        %v2224 = vpack.c.b16 %v2204, %v2203
        %v2225 = vpack.c.b16 %v2206, %v2205
        %v2226 = vpack.c.b16 %v2208, %v2207
        %v2227 = vpack.c.b16 %v2210, %v2209
        %v2228 = vpack.c.b16 %v2212, %v2211
        %2245 = vmatpush.bf16.msra.mxu0 %v2220
        %2246 = vmatpush.bf16.msra.mxu0 %v2219
        %2247 = vmatpush.bf16.msra.mxu0 %v2218
        %2248 = vmatpush.bf16.msra.mxu0 %v2217
        %2249 = vmatpush.bf16.msra.mxu0 %v2216
        %2250 = vmatpush.bf16.msra.mxu0 %v2215
        %2251 = vmatpush.bf16.msra.mxu0 %v2214
        %2252 = vmatpush.bf16.msra.mxu0 %v2213
        %2253 = vmatmul.bf16.gmra.mxu0 %v2111
        %v2254 = vpop.f32.mrf.mxu0
        %v2255 = vadd.f32 %v2147, %v2254
        %v2256 = vpop.f32.mrf.mxu0
        %v2257 = vadd.f32 %v2147, %v2256
        %2258 = vdwg.mxu0
        %2259 = vmatpush.bf16.msra.mxu0 %v2228
        %2260 = vmatpush.bf16.msra.mxu0 %v2227
        %2261 = vmatpush.bf16.msra.mxu0 %v2226
        %2262 = vmatpush.bf16.msra.mxu0 %v2225
        %2263 = vmatpush.bf16.msra.mxu0 %v2224
        %2264 = vmatpush.bf16.msra.mxu0 %v2223
        %2265 = vmatpush.bf16.msra.mxu0 %v2222
        %2266 = vmatpush.bf16.msra.mxu0 %v2221
        %2267 = vmatmul.bf16.gmra.mxu0 %v2112
        %v2268 = vpop.f32.mrf.mxu0
        %v2269 = vadd.f32 %v2255, %v2268
        %v2270 = vpop.f32.mrf.mxu0
        %v2271 = vadd.f32 %v2257, %v2270
        %2272 = vdwg.mxu0
        %v2273 = vadd.f32 %v2269, %v1942
        %v2274 = vadd.f32 %v2271, %v1943
        %2275 = vadd.xlane.f32.xlu0 %v2273
        %v2276 = vpop.xlane.xlu0 %2275
        %2277 = vadd.xlane.f32.xlu0 %v2274
        %v2278 = vpop.xlane.xlu0 %2277
        %v2279 = vmul.f32 %v2276, %v1895
        %v2280 = vmul.f32 %v2278, %v1895
        %v2281 = vsub.f32 %v2273, %v2279
        %v2282 = vsub.f32 %v2274, %v2280
        %v2283 = vmul.f32 %v2281, %v2281
        %v2284 = vmul.f32 %v2282, %v2282
        %2285 = vadd.xlane.f32.xlu0 %v2283
        %v2286 = vpop.xlane.xlu0 %2285
        %2287 = vadd.xlane.f32.xlu0 %v2284
        %v2288 = vpop.xlane.xlu0 %2287
        %v2289 = vmul.f32 %v2286, %v1895
        %v2290 = vmul.f32 %v2288, %v1895
        %v2291 = vadd.f32 %v2289, 1e-12
        %v2292 = vadd.f32 %v2290, 1e-12
        %v2293 = vrsqrt.pop %v2291
        %v2294 = vmul.f32 %v2293, %v2291
        %v2295 = vmul.f32 %v2294, %v2293
        %v2296 = vmul.f32 0.5, %v2295
        %v2297 = vsub.f32 1.5, %v2296
        %v2298 = vmul.f32 %v2293, %v2297
        %vm2299 = vweird.f32 %v2291
        %vm2300 = vweird.f32 %v2293
        %vm2301 = vmor %vm2299, %vm2300
        %v2302 = vsel %vm2301, %v2293, %v2298
        %v2303 = vrsqrt.pop %v2292
        %v2304 = vmul.f32 %v2303, %v2292
        %v2305 = vmul.f32 %v2304, %v2303
        %v2306 = vmul.f32 0.5, %v2305
        %v2307 = vsub.f32 1.5, %v2306
        %v2308 = vmul.f32 %v2303, %v2307
        %vm2309 = vweird.f32 %v2292
        %vm2310 = vweird.f32 %v2303
        %vm2311 = vmor %vm2309, %vm2310
        %v2312 = vsel %vm2311, %v2303, %v2308
        %v2313 = vmul.f32 %v2281, %v2302
        %v2314 = vmul.f32 %v2282, %v2312
        %v2315 = vld [vmem:[%s972] sm:$0x1]
        %v2317 = vperm.slane %v2315, 0
        %v2319 = vmul.f32 %v2313, %v2317
        %v2320 = vmul.f32 %v2314, %v2317
        %v2321 = vld [vmem:[%s975] sm:$0x1]
        %v2323 = vperm.slane %v2321, 0
        %v2325 = vadd.f32 %v2319, %v2323
        %v2326 = vadd.f32 %v2320, %v2323
        %v2327 = vpack.c.bf16 %v2325, %v2325
        %v2328 = vpack.c.bf16 %v2326, %v2326
        %2329 = vst [vmem:[#allocation2] sm:$0xf] %v2327
        %2330 = vst [vmem:[#allocation2 + $0x4] sm:$0xf] %v2328
        %p2331 = scmp.eq.s32.totalorder %s36, 1
        // Predicated region
        $region121: #{_lambda_.1} parent=115 // pred_check
          %p2332 = pneg %p2331
        $region122: #{_lambda_.1} parent=115 // pred_check_branch
          %2334 = sbr.rel (%p2332) target = $region124
        $region123: #{_lambda_.1} parent=115 // pred_region
          %v2335 = vld [vmem:[%s20] sm:$0xf]
          %v2336 = vld [vmem:[%s20 + $0x4] sm:$0xf]
          %v2337 = vld [vmem:[%s20 + $0x8] sm:$0xf]
          %v2338 = vld [vmem:[%s20 + $0xc] sm:$0xf]
          %v2339 = vld [vmem:[%s20 + $0x10] sm:$0xf]
          %v2340 = vld [vmem:[%s20 + $0x14] sm:$0xf]
          %v2341 = vld [vmem:[%s20 + $0x18] sm:$0xf]
          %v2342 = vld [vmem:[%s20 + $0x1c] sm:$0xf]
          %v2343 = vld [vmem:[%s20 + $0x20] sm:$0xf]
          %v2344 = vld [vmem:[%s20 + $0x24] sm:$0xf]
          %v2345 = vld [vmem:[%s20 + $0x28] sm:$0xf]
          %v2346 = vld [vmem:[%s20 + $0x2c] sm:$0xf]
          %v2347 = vld [vmem:[%s20 + $0x30] sm:$0xf]
          %v2348 = vld [vmem:[%s20 + $0x34] sm:$0xf]
          %v2349 = vld [vmem:[%s20 + $0x38] sm:$0xf]
          %v2350 = vld [vmem:[%s20 + $0x3c] sm:$0xf]
          %v2351 = vld [vmem:[%s21] sm:$0x1]
          %v2353 = vperm.slane %v2351, 0
          %v2357 = vunpack.c.l.b16 %v2327
          %v2358 = vunpack.c.l.b16 %v2328
          %v2359 = vpack.c.b16 %v2357, %v2357
          %v2360 = vpack.c.b16 %v2358, %v2358
          %v2361 = vunpack.c.l.b16 %v2359
          %v2362 = vunpack.c.l.b16 %v2360
          %v2363 = vrot.slane %v2362, 7
          %vm2364 = vcmask 1041409
          %v2365 = vsel %vm2364, %v2363, %v2361
          %v2366 = vpack.c.b16 %v2365, %v2365
          %v2384 = vunpack.c.l.b16 %v2335
          %v2385 = vunpack.c.l.b16 %v2336
          %v2386 = vunpack.c.l.b16 %v2337
          %v2387 = vunpack.c.l.b16 %v2338
          %v2388 = vunpack.c.l.b16 %v2339
          %v2389 = vunpack.c.l.b16 %v2340
          %v2390 = vunpack.c.l.b16 %v2341
          %v2391 = vunpack.c.l.b16 %v2342
          %v2392 = vunpack.c.l.b16 %v2343
          %v2393 = vunpack.c.l.b16 %v2344
          %v2394 = vunpack.c.l.b16 %v2345
          %v2395 = vunpack.c.l.b16 %v2346
          %v2396 = vunpack.c.l.b16 %v2347
          %v2397 = vunpack.c.l.b16 %v2348
          %v2398 = vunpack.c.l.b16 %v2349
          %v2399 = vunpack.c.l.b16 %v2350
          %v2400 = vpack.c.b16 %v2385, %v2384
          %v2401 = vpack.c.b16 %v2387, %v2386
          %v2402 = vpack.c.b16 %v2389, %v2388
          %v2403 = vpack.c.b16 %v2391, %v2390
          %v2404 = vpack.c.b16 %v2393, %v2392
          %v2405 = vpack.c.b16 %v2395, %v2394
          %v2406 = vpack.c.b16 %v2397, %v2396
          %v2407 = vpack.c.b16 %v2399, %v2398
          %2416 = vmatpush.bf16.msra.mxu0 %v2407
          %2417 = vmatpush.bf16.msra.mxu0 %v2406
          %2418 = vmatpush.bf16.msra.mxu0 %v2405
          %2419 = vmatpush.bf16.msra.mxu0 %v2404
          %2420 = vmatpush.bf16.msra.mxu0 %v2403
          %2421 = vmatpush.bf16.msra.mxu0 %v2402
          %2422 = vmatpush.bf16.msra.mxu0 %v2401
          %2423 = vmatpush.bf16.msra.mxu0 %v2400
          %2424 = vmatmul.bf16.gmra.mxu0 %v2366
          %v2425 = vpop.f32.mrf.mxu0
          %v2426 = vadd.f32 %v2353, %v2425
          %v2427 = vpop.f32.mrf.mxu0
          %2428 = vdwg.mxu0
          %v2429 = vtanh.pop %v2426
          %v2430 = vpack.c.bf16 %v2429, %v2429
          %v2431 = vld [vmem:[%s22] sm:$0xf]
          %v2432 = vld [vmem:[%s22 + $0x4] sm:$0xf]
          %v2433 = vld [vmem:[%s22 + $0x8] sm:$0xf]
          %v2434 = vld [vmem:[%s22 + $0xc] sm:$0xf]
          %v2435 = vld [vmem:[%s22 + $0x10] sm:$0xf]
          %v2436 = vld [vmem:[%s22 + $0x14] sm:$0xf]
          %v2437 = vld [vmem:[%s22 + $0x18] sm:$0xf]
          %v2438 = vld [vmem:[%s22 + $0x1c] sm:$0xf]
          %v2439 = vld [vmem:[%s22 + $0x20] sm:$0xf]
          %v2440 = vld [vmem:[%s22 + $0x24] sm:$0xf]
          %v2441 = vld [vmem:[%s22 + $0x28] sm:$0xf]
          %v2442 = vld [vmem:[%s22 + $0x2c] sm:$0xf]
          %v2443 = vld [vmem:[%s22 + $0x30] sm:$0xf]
          %v2444 = vld [vmem:[%s22 + $0x34] sm:$0xf]
          %v2445 = vld [vmem:[%s22 + $0x38] sm:$0xf]
          %v2446 = vld [vmem:[%s22 + $0x3c] sm:$0xf]
          %v2447 = vld [vmem:[%s23] sm:$0x1]
          %v2449 = vperm.slane %v2447, 0
          %v2467 = vunpack.c.l.b16 %v2431
          %v2468 = vunpack.c.l.b16 %v2432
          %v2469 = vunpack.c.l.b16 %v2433
          %v2470 = vunpack.c.l.b16 %v2434
          %v2471 = vunpack.c.l.b16 %v2435
          %v2472 = vunpack.c.l.b16 %v2436
          %v2473 = vunpack.c.l.b16 %v2437
          %v2474 = vunpack.c.l.b16 %v2438
          %v2475 = vunpack.c.l.b16 %v2439
          %v2476 = vunpack.c.l.b16 %v2440
          %v2477 = vunpack.c.l.b16 %v2441
          %v2478 = vunpack.c.l.b16 %v2442
          %v2479 = vunpack.c.l.b16 %v2443
          %v2480 = vunpack.c.l.b16 %v2444
          %v2481 = vunpack.c.l.b16 %v2445
          %v2482 = vunpack.c.l.b16 %v2446
          %v2483 = vpack.c.b16 %v2468, %v2467
          %v2484 = vpack.c.b16 %v2470, %v2469
          %v2485 = vpack.c.b16 %v2472, %v2471
          %v2486 = vpack.c.b16 %v2474, %v2473
          %v2487 = vpack.c.b16 %v2476, %v2475
          %v2488 = vpack.c.b16 %v2478, %v2477
          %v2489 = vpack.c.b16 %v2480, %v2479
          %v2490 = vpack.c.b16 %v2482, %v2481
          %2499 = vmatpush.bf16.msra.mxu0 %v2490
          %2500 = vmatpush.bf16.msra.mxu0 %v2489
          %2501 = vmatpush.bf16.msra.mxu0 %v2488
          %2502 = vmatpush.bf16.msra.mxu0 %v2487
          %2503 = vmatpush.bf16.msra.mxu0 %v2486
          %2504 = vmatpush.bf16.msra.mxu0 %v2485
          %2505 = vmatpush.bf16.msra.mxu0 %v2484
          %2506 = vmatpush.bf16.msra.mxu0 %v2483
          %2507 = vmatmul.bf16.gmra.mxu0 %v2430
          %v2508 = vpop.f32.mrf.mxu0
          %v2509 = vadd.f32 %v2449, %v2508
          %v2510 = vpop.f32.mrf.mxu0
          %2511 = vdwg.mxu0
          %2512 = vst [vmem:[#allocation3] sm:$0x3] %v2509
        $region124: #{_lambda_.1} parent=115 // pred_fallthru
          _
        // Predicated region
        $region125: #{_lambda_.1} parent=115 // pred_check
          %p2513 = pneg %p633
        $region126: #{_lambda_.1} parent=115 // pred_check_branch
          %2515 = sbr.rel (%p2513) target = $region128
        $region127: #{_lambda_.1} parent=115 // pred_region
          %2517 = vsyncadd [#allocation4], 0
          %s2519 = sshll.u32 [#allocation3], 4
          %s2520 = int_to_ptr.vmem [resolvable:$true] %s2519
          %s2521 = sshll.u32 %s24, 4
          %s2522 = int_to_ptr.hbm [resolvable:$true] %s2521
          %2524 = dma.vmem_to_hbm [thread:$0]  %s2520, 32, %s2522, [#allocation4]
        $region128: #{_lambda_.1} parent=115 // pred_fallthru
          _
        // Predicated region
        $region129: #{_lambda_.1} parent=115 // pred_check
          %p2525 = pneg %p633
        $region130: #{_lambda_.1} parent=115 // pred_check_branch
          %2527 = sbr.rel (%p2525) target = $region132
        $region131: #{_lambda_.1} parent=115 // pred_region
          %2529 = dma.done [#allocation4], 32
        $region132: #{_lambda_.1} parent=115 // pred_fallthru
          _
      $region116: #{_lambda_.1} parent=5 // pred_fallthru
        _
      %p2530 = scmp.le.s32.totalorder 2, %s31
      // Predicated region
      $region133: #{_lambda_.1} parent=5 // pred_check
        %p2531 = pneg %p2530
      $region134: #{_lambda_.1} parent=5 // pred_check_branch
        %2533 = sbr.rel (%p2531) target = $region136
      $region135: #{_lambda_.1} parent=5 // pred_region
        %s2534 = ssub.s32 %s31, 2
      $region136: #{_lambda_.1} parent=5 // pred_fallthru
        _
    $region6: #{_lambda_.1} parent=1 // loop_footer
      %s35 = sadd.s32 1, %s31
    $region7: #{_lambda_.1} parent=1 // loop_footer_branch
      %30 = sbr.rel target = $region3
    $region8: #{_lambda_.1} parent=1 // loop_exit
      _
    %2535 = vsyncpa [#allocation4], 1
    %s2536 = scalar_lea.sflag [#allocation4], 1
    %2537 = vsyncpa %s2536, 1

</llo_original>
